<compile_context>
chip_gen: v7x
topology: tpu7x:2x2x1
jax: 0.10.0
libtpu: 0.0.40
codegen_flags: <defaults>
</compile_context>

<pallas_src>
import math
import functools

import jax
import jax.numpy as jnp
from jax.experimental import pallas as pl
from jax.experimental.pallas import tpu as pltpu


def _round_up(v, m):
    return (v + m - 1) // m * m


def _vmem_budget_bytes():
    """Per-generation VMEM budget for the batch-tile sizing."""
    try:
        cap = int(getattr(pltpu.get_tpu_info(), "vmem_capacity_bytes", 0) or 0)
    except Exception:
        cap = 0
    if cap > 0:
        # Stay well under the scoped-VMEM defaults (v5e 16 MiB, v6e/v7x 32 MiB;
        # v7x has only 64 MiB physical VMEM).
        return max(8 << 20, min(cap // 8, 16 << 20))
    return 12 << 20  # conservative v5e-safe fallback


def _pick_batch_tile(B, per_batch_vmem, fixed_vmem, budget_bytes):
    """Largest sublane-aligned TB that fits the VMEM budget with >=2 grid steps."""
    if B < 16:
        return B  # cannot form two sublane-aligned (>=8-row) tiles; single full tile
    avail = max(budget_bytes - fixed_vmem, 8 * per_batch_vmem)
    cap = max(8, min(2048, (avail // per_batch_vmem) // 8 * 8))
    # >=2 grid steps always (v7x megacore + pipeline overlap); >=4 steps once the
    # tiles would still be >=128 rows, which amortizes the ~0.35us per-step cost.
    want = pl.cdiv(B, 4) if B >= 4 * 128 else pl.cdiv(B, 2)
    return max(8, min(cap, _round_up(want, 8)))


def _graph_encoder_kernel(x_ref, adj_ref, w1_ref, b1_ref, w2_ref, w3m_ref,
                          ob_ref, out_ref, *, num_points, hidden, out_features):
    """One batch tile.

    x_ref   : (TB, N*F_in)  node features, row per graph
    adj_ref : (TB, N*N)     adjacency, row per graph
    w1_ref  : (N*F_in, N*H)  = kron(I_N, W1)
    b1_ref  : (1, N*H)       = tile(b1, N)
    w2_ref  : (N*H, N*F_out) = kron(I_N, W2)
    w3m_ref : (N*N, 2*N)     = kron(w3^T, I_N)
    ob_ref  : (1, 2*F_out)   = b3[o] + (sum_n w3[o,n]) * b2[f]
    out_ref : (TB, 2*F_out)
    """
    N, H, F = num_points, hidden, out_features

    x = x_ref[...]                                    # (TB, N*F_in)
    adj = adj_ref[...]                                # (TB, N*N)

    # conv1 support: one lane-dense MXU matmul with the block-diagonal weight.
    s1 = jnp.dot(x, w1_ref[...], preferred_element_type=jnp.float32)   # (TB, N*H)

    # conv1 propagate: h1[:, n*H:(n+1)*H] = sum_m adj[:, n*N+m] * s1[:, m*H:(m+1)*H]
    # N*N broadcast-FMAs on the VPU (each per-graph matmul is only 8x8 -> far too
    # small to feed the MXU; the VALU slots are otherwise idle here).
    h_slabs = []
    for n in range(N):
        acc = adj[:, n * N:n * N + 1] * s1[:, :H]
        for m in range(1, N):
            acc = acc + adj[:, n * N + m:n * N + m + 1] * s1[:, m * H:(m + 1) * H]
        h_slabs.append(acc)
    h1 = jnp.concatenate(h_slabs, axis=-1)            # (TB, N*H) f32
    h1 = jnp.maximum(h1 + b1_ref[...], 0.0)           # bias + ReLU, lane-dense

    # conv2 support: second lane-dense MXU matmul.
    s2 = jnp.dot(h1, w2_ref[...], preferred_element_type=jnp.float32)  # (TB, N*F_out)

    # conv2 propagate fused with conv3 (1x1 conv over the N point-channels):
    #   A3[b, o*N+m]  = sum_n w3[o,n] * adj[b, n*N+m]          (adj @ kron(w3^T, I_N))
    #   out[b, o*F+f] = sum_m A3[b, o*N+m] * s2[b, m*F+f] + b3[o] + (sum_n w3[o,n]) b2[f]
    a3 = jnp.dot(adj, w3m_ref[...], preferred_element_type=jnp.float32)  # (TB, 2*N)
    ob = ob_ref[...]                                   # (1, 2*F_out)

    o_slabs = []
    for o in range(2):
        acc = a3[:, o * N:o * N + 1] * s2[:, :F] + ob[:, o * F:(o + 1) * F]
        for m in range(1, N):
            acc = acc + a3[:, o * N + m:o * N + m + 1] * s2[:, m * F:(m + 1) * F]
        o_slabs.append(acc)
    # Flat (TB, 2*F_out) block whose last dim equals the output array width ->
    # contiguous HBM writeback (lane-dense out_spec feedback).
    out_ref[...] = jnp.concatenate(o_slabs, axis=-1).astype(out_ref.dtype)


def graph_encoder_forward(x, adj, params, *, batch_tile=None):
    """GraphEncoder forward. Returns (B, 2, F_out, 1) float32 (PyTorch NCHW)."""
    B, N, F_in = x.shape
    assert adj.shape == (B, N, N), adj.shape
    w1, b1, w2, b2, w3, b3 = (params["w1"], params["b1"], params["w2"],
                              params["b2"], params["w3"], params["b3"])
    H = w1.shape[1]
    F_out = w2.shape[1]
    f32 = jnp.float32

    # Free row-major views of the activations: no HBM copy, no cast, no pad.
    x2d = x.reshape(B, N * F_in)
    adj2d = adj.reshape(B, N * N)

    # One-time tiny weight prep (lane-dense / folded forms).
    eye_n = jnp.eye(N, dtype=f32)
    w1b = jnp.kron(eye_n, w1.astype(f32))                      # (N*F_in, N*H)
    w2b = jnp.kron(eye_n, w2.astype(f32))                      # (N*H, N*F_out)
    b1r = jnp.tile(b1.astype(f32), N).reshape(1, N * H)        # b1r[0, n*H+h] = b1[h]
    w3_2d = w3.reshape(2, N).astype(f32)                       # (2, N, 1, 1) -> (2, N)
    w3map = jnp.kron(w3_2d.T, eye_n)                           # (N*N, 2*N)
    out_bias = (b3.astype(f32)[:, None]
                + w3_2d.sum(axis=1, keepdims=True) * b2.astype(f32)[None, :]
                ).reshape(1, 2 * F_out)                        # b3[o] + (sum_n w3[o,n]) b2[f]

    # ---- audited VMEM accounting (drives TB and vmem_limit_bytes) ----
    lane = lambda c: _round_up(c, 128)
    sub = lambda r: _round_up(r, 8)
    per_batch_vmem = (
        2 * 4 * (lane(N * F_in) + lane(N * N) + lane(2 * F_out))            # dbl-buffered in/out rows
        + 4 * (3 * lane(N * H) + lane(N * F_out) + lane(2 * N) + lane(2 * F_out)))  # f32 temps
    fixed_vmem = 2 * 4 * (sub(N * F_in) * lane(N * H)
                          + sub(N * H) * lane(N * F_out)
                          + sub(N * N) * lane(2 * N)
                          + sub(1) * lane(N * H)
                          + sub(1) * lane(2 * F_out))                        # dbl-buffered weights

    TB = batch_tile or _pick_batch_tile(B, per_batch_vmem, fixed_vmem, _vmem_budget_bytes())
    num_tiles = pl.cdiv(B, TB)
    vmem_limit = int(min(32 << 20,
                         max(16 << 20,
                             int(1.5 * (fixed_vmem + TB * per_batch_vmem)) + (2 << 20))))

    flops = B * (2 * (N * F_in) * (N * H) + 2 * N * N * H
                 + 2 * (N * H) * (N * F_out) + 2 * (N * N) * (2 * N)
                 + 2 * 2 * N * F_out)
    bytes_accessed = 4 * (x2d.size + adj2d.size + B * 2 * F_out
                          + w1b.size + w2b.size + w3map.size + b1r.size + out_bias.size)
    cost = pl.CostEstimate(flops=int(flops), transcendentals=0,
                           bytes_accessed=int(bytes_accessed))

    kernel = functools.partial(_graph_encoder_kernel,
                               num_points=N, hidden=H, out_features=F_out)

    out2d = pl.pallas_call(
        kernel,
        out_shape=jax.ShapeDtypeStruct((B, 2 * F_out), jnp.float32),
        grid_spec=pltpu.PrefetchScalarGridSpec(
            num_scalar_prefetch=0,
            grid=(num_tiles,),
            in_specs=[
                pl.BlockSpec((TB, N * F_in), lambda b: (b, 0)),        # x rows
                pl.BlockSpec((TB, N * N), lambda b: (b, 0)),           # adj rows
                pl.BlockSpec((N * F_in, N * H), lambda b: (0, 0)),     # kron(I, W1)
                pl.BlockSpec((1, N * H), lambda b: (0, 0)),            # tiled b1
                pl.BlockSpec((N * H, N * F_out), lambda b: (0, 0)),    # kron(I, W2)
                pl.BlockSpec((N * N, 2 * N), lambda b: (0, 0)),        # kron(w3^T, I)
                pl.BlockSpec((1, 2 * F_out), lambda b: (0, 0)),        # folded bias
            ],
            out_specs=pl.BlockSpec((TB, 2 * F_out), lambda b: (b, 0)),
        ),
        compiler_params=pltpu.CompilerParams(
            dimension_semantics=("parallel",),
            vmem_limit_bytes=vmem_limit),
        cost_estimate=cost,
    )(x2d, adj2d, w1b, b1r, w2b, w3map, out_bias)

    # Row-major (B, 2*F_out) == PyTorch NCHW (B, 2, F_out, 1): free reshape.
    return out2d.reshape(B, 2, F_out, 1)


def init_params(key, in_features, num_points, hidden_features, out_features):
    ks = jax.random.split(key, 6)
    # GraphConvolution.reset_parameters: uniform(-stdv, stdv), stdv = 1/sqrt(out_dim)
    stdv1 = 1.0 / math.sqrt(hidden_features)
    w1 = jax.random.uniform(ks[0], (in_features, hidden_features), jnp.float32, -stdv1, stdv1)
    b1 = jax.random.uniform(ks[1], (hidden_features,), jnp.float32, -stdv1, stdv1)
    stdv2 = 1.0 / math.sqrt(out_features)
    w2 = jax.random.uniform(ks[2], (hidden_features, out_features), jnp.float32, -stdv2, stdv2)
    b2 = jax.random.uniform(ks[3], (out_features,), jnp.float32, -stdv2, stdv2)
    # Conv2d(num_points, 2, 1x1) default init: U(-k, k), k = 1/sqrt(fan_in)
    k3 = 1.0 / math.sqrt(num_points)
    w3 = jax.random.uniform(ks[4], (2, num_points, 1, 1), jnp.float32, -k3, k3)
    b3 = jax.random.uniform(ks[5], (2,), jnp.float32, -k3, k3)
    return dict(w1=w1, b1=b1, w2=w2, b2=b2, w3=w3, b3=b3)


def reference_forward(x, adj, params):
    """Pure-JAX reference; exactly the PyTorch module forward."""
    s1 = jnp.einsum("bnf,fh->bnh", x, params["w1"])
    h1 = jax.nn.relu(jnp.einsum("bnm,bmh->bnh", adj, s1) + params["b1"])
    s2 = jnp.einsum("bnh,hf->bnf", h1, params["w2"])
    h2 = jnp.einsum("bnm,bmf->bnf", adj, s2) + params["b2"]
    w3 = params["w3"].reshape(2, -1)
    out = jnp.einsum("on,bnf->bof", w3, h2) + params["b3"][None, :, None]
    return out[..., None]


if __name__ == "__main__":
    num_points, in_features, hidden_features, out_features = 8, 16, 32, 16
    key = jax.random.PRNGKey(0)
    kp, kx, kadj, kx2, kadj2 = jax.random.split(key, 5)
    params = init_params(kp, in_features, num_points, hidden_features, out_features)

    fwd = jax.jit(graph_encoder_forward)

    # Small single-tile case (B=2).
    B = 2
    x = jax.random.normal(kx, (B, num_points, in_features), jnp.float32)
    adj = jax.random.uniform(kadj, (B, num_points, num_points), jnp.float32)
    out = jax.block_until_ready(fwd(x, adj, params))
    ref = reference_forward(x, adj, params)
    assert out.shape == (B, 2, out_features, 1), out.shape
    assert jnp.allclose(out, ref, atol=5e-4, rtol=5e-4), float(jnp.max(jnp.abs(out - ref)))

    # Multi-tile case exercising the batch grid (2 grid steps of 16 graphs each).
    B2 = 32
    x2 = jax.random.normal(kx2, (B2, num_points, in_features), jnp.float32)
    adj2 = jax.random.uniform(kadj2, (B2, num_points, num_points), jnp.float32)
    out2 = jax.block_until_ready(fwd(x2, adj2, params))
    ref2 = reference_forward(x2, adj2, params)
    assert out2.shape == (B2, 2, out_features, 1), out2.shape
    assert jnp.allclose(out2, ref2, atol=5e-4, rtol=5e-4), float(jnp.max(jnp.abs(out2 - ref2)))

    print("KERNEL_OK")
</pallas_src>

<mosaic_0001>
module attributes {stable_mosaic.version = 11 : i64} {
  func.func @_graph_encoder_kernel(%arg0: i32, %arg1: memref<2x128xf32, #tpu.memory_space<vmem>>, %arg2: memref<2x64xf32, #tpu.memory_space<vmem>>, %arg3: memref<128x256xf32, #tpu.memory_space<vmem>>, %arg4: memref<1x256xf32, #tpu.memory_space<vmem>>, %arg5: memref<256x128xf32, #tpu.memory_space<vmem>>, %arg6: memref<64x16xf32, #tpu.memory_space<vmem>>, %arg7: memref<1x32xf32, #tpu.memory_space<vmem>>, %arg8: memref<2x32xf32, #tpu.memory_space<vmem>>) attributes {dimension_semantics = [#tpu.dimension_semantics<parallel>], iteration_bounds = array<i64: 1>, scalar_prefetch = 0 : i64, scratch_operands = 0 : i64, tpu.core_type = #tpu.core_type<tc>, window_params = [{transform_indices = @transform_0, window_bounds = array<i64: 2, 128>}, {transform_indices = @transform_1, window_bounds = array<i64: 2, 64>}, {pipeline_mode = #tpu.pipeline_mode<synchronous>, transform_indices = @transform_2, window_bounds = array<i64: 128, 256>}, {pipeline_mode = #tpu.pipeline_mode<synchronous>, transform_indices = @transform_3, window_bounds = array<i64: 1, 256>}, {pipeline_mode = #tpu.pipeline_mode<synchronous>, transform_indices = @transform_4, window_bounds = array<i64: 256, 128>}, {pipeline_mode = #tpu.pipeline_mode<synchronous>, transform_indices = @transform_5, window_bounds = array<i64: 64, 16>}, {pipeline_mode = #tpu.pipeline_mode<synchronous>, transform_indices = @transform_6, window_bounds = array<i64: 1, 32>}, {transform_indices = @transform_7, window_bounds = array<i64: 2, 32>}]} {
    %c0 = arith.constant 0 : index
    %c0_0 = arith.constant 0 : index
    %0 = vector.load %arg1[%c0, %c0_0] : memref<2x128xf32, #tpu.memory_space<vmem>>, vector<2x128xf32>
    %c0_1 = arith.constant 0 : index
    %c0_2 = arith.constant 0 : index
    %1 = vector.load %arg2[%c0_1, %c0_2] : memref<2x64xf32, #tpu.memory_space<vmem>>, vector<2x64xf32>
    %c0_3 = arith.constant 0 : index
    %c0_4 = arith.constant 0 : index
    %2 = vector.load %arg3[%c0_3, %c0_4] : memref<128x256xf32, #tpu.memory_space<vmem>>, vector<128x256xf32>
    %cst = arith.constant dense<0.000000e+00> : vector<2x256xf32>
    %3 = tpu.matmul %0, %2, %cst {dimension_numbers = #tpu.dot_dimension_numbers<[1], [0], [0], [1], [0, 0, 1, 1], [], []>} : vector<2x128xf32>, vector<128x256xf32>, vector<2x256xf32> -> vector<2x256xf32>
    %4 = vector.extract_strided_slice %1 {offsets = [0, 0], sizes = [2, 1], strides = [1, 1]} : vector<2x64xf32> to vector<2x1xf32>
    %5 = vector.extract_strided_slice %3 {offsets = [0, 0], sizes = [2, 32], strides = [1, 1]} : vector<2x256xf32> to vector<2x32xf32>
    %6 = vector.broadcast %4 : vector<2x1xf32> to vector<2x32xf32>
    %7 = arith.mulf %6, %5 : vector<2x32xf32>
    %8 = vector.extract_strided_slice %1 {offsets = [0, 1], sizes = [2, 1], strides = [1, 1]} : vector<2x64xf32> to vector<2x1xf32>
    %9 = vector.extract_strided_slice %3 {offsets = [0, 32], sizes = [2, 32], strides = [1, 1]} : vector<2x256xf32> to vector<2x32xf32>
    %10 = vector.broadcast %8 : vector<2x1xf32> to vector<2x32xf32>
    %11 = arith.mulf %10, %9 : vector<2x32xf32>
    %12 = arith.addf %7, %11 : vector<2x32xf32>
    %13 = vector.extract_strided_slice %1 {offsets = [0, 2], sizes = [2, 1], strides = [1, 1]} : vector<2x64xf32> to vector<2x1xf32>
    %14 = vector.extract_strided_slice %3 {offsets = [0, 64], sizes = [2, 32], strides = [1, 1]} : vector<2x256xf32> to vector<2x32xf32>
    %15 = vector.broadcast %13 : vector<2x1xf32> to vector<2x32xf32>
    %16 = arith.mulf %15, %14 : vector<2x32xf32>
    %17 = arith.addf %12, %16 : vector<2x32xf32>
    %18 = vector.extract_strided_slice %1 {offsets = [0, 3], sizes = [2, 1], strides = [1, 1]} : vector<2x64xf32> to vector<2x1xf32>
    %19 = vector.extract_strided_slice %3 {offsets = [0, 96], sizes = [2, 32], strides = [1, 1]} : vector<2x256xf32> to vector<2x32xf32>
    %20 = vector.broadcast %18 : vector<2x1xf32> to vector<2x32xf32>
    %21 = arith.mulf %20, %19 : vector<2x32xf32>
    %22 = arith.addf %17, %21 : vector<2x32xf32>
    %23 = vector.extract_strided_slice %1 {offsets = [0, 4], sizes = [2, 1], strides = [1, 1]} : vector<2x64xf32> to vector<2x1xf32>
    %24 = vector.extract_strided_slice %3 {offsets = [0, 128], sizes = [2, 32], strides = [1, 1]} : vector<2x256xf32> to vector<2x32xf32>
    %25 = vector.broadcast %23 : vector<2x1xf32> to vector<2x32xf32>
    %26 = arith.mulf %25, %24 : vector<2x32xf32>
    %27 = arith.addf %22, %26 : vector<2x32xf32>
    %28 = vector.extract_strided_slice %1 {offsets = [0, 5], sizes = [2, 1], strides = [1, 1]} : vector<2x64xf32> to vector<2x1xf32>
    %29 = vector.extract_strided_slice %3 {offsets = [0, 160], sizes = [2, 32], strides = [1, 1]} : vector<2x256xf32> to vector<2x32xf32>
    %30 = vector.broadcast %28 : vector<2x1xf32> to vector<2x32xf32>
    %31 = arith.mulf %30, %29 : vector<2x32xf32>
    %32 = arith.addf %27, %31 : vector<2x32xf32>
    %33 = vector.extract_strided_slice %1 {offsets = [0, 6], sizes = [2, 1], strides = [1, 1]} : vector<2x64xf32> to vector<2x1xf32>
    %34 = vector.extract_strided_slice %3 {offsets = [0, 192], sizes = [2, 32], strides = [1, 1]} : vector<2x256xf32> to vector<2x32xf32>
    %35 = vector.broadcast %33 : vector<2x1xf32> to vector<2x32xf32>
    %36 = arith.mulf %35, %34 : vector<2x32xf32>
    %37 = arith.addf %32, %36 : vector<2x32xf32>
    %38 = vector.extract_strided_slice %1 {offsets = [0, 7], sizes = [2, 1], strides = [1, 1]} : vector<2x64xf32> to vector<2x1xf32>
    %39 = vector.extract_strided_slice %3 {offsets = [0, 224], sizes = [2, 32], strides = [1, 1]} : vector<2x256xf32> to vector<2x32xf32>
    %40 = vector.broadcast %38 : vector<2x1xf32> to vector<2x32xf32>
    %41 = arith.mulf %40, %39 : vector<2x32xf32>
    %42 = arith.addf %37, %41 : vector<2x32xf32>
    %43 = vector.extract_strided_slice %1 {offsets = [0, 8], sizes = [2, 1], strides = [1, 1]} : vector<2x64xf32> to vector<2x1xf32>
    %44 = vector.extract_strided_slice %3 {offsets = [0, 0], sizes = [2, 32], strides = [1, 1]} : vector<2x256xf32> to vector<2x32xf32>
    %45 = vector.broadcast %43 : vector<2x1xf32> to vector<2x32xf32>
    %46 = arith.mulf %45, %44 : vector<2x32xf32>
    %47 = vector.extract_strided_slice %1 {offsets = [0, 9], sizes = [2, 1], strides = [1, 1]} : vector<2x64xf32> to vector<2x1xf32>
    %48 = vector.extract_strided_slice %3 {offsets = [0, 32], sizes = [2, 32], strides = [1, 1]} : vector<2x256xf32> to vector<2x32xf32>
    %49 = vector.broadcast %47 : vector<2x1xf32> to vector<2x32xf32>
    %50 = arith.mulf %49, %48 : vector<2x32xf32>
    %51 = arith.addf %46, %50 : vector<2x32xf32>
    %52 = vector.extract_strided_slice %1 {offsets = [0, 10], sizes = [2, 1], strides = [1, 1]} : vector<2x64xf32> to vector<2x1xf32>
    %53 = vector.extract_strided_slice %3 {offsets = [0, 64], sizes = [2, 32], strides = [1, 1]} : vector<2x256xf32> to vector<2x32xf32>
    %54 = vector.broadcast %52 : vector<2x1xf32> to vector<2x32xf32>
    %55 = arith.mulf %54, %53 : vector<2x32xf32>
    %56 = arith.addf %51, %55 : vector<2x32xf32>
    %57 = vector.extract_strided_slice %1 {offsets = [0, 11], sizes = [2, 1], strides = [1, 1]} : vector<2x64xf32> to vector<2x1xf32>
    %58 = vector.extract_strided_slice %3 {offsets = [0, 96], sizes = [2, 32], strides = [1, 1]} : vector<2x256xf32> to vector<2x32xf32>
    %59 = vector.broadcast %57 : vector<2x1xf32> to vector<2x32xf32>
    %60 = arith.mulf %59, %58 : vector<2x32xf32>
    %61 = arith.addf %56, %60 : vector<2x32xf32>
    %62 = vector.extract_strided_slice %1 {offsets = [0, 12], sizes = [2, 1], strides = [1, 1]} : vector<2x64xf32> to vector<2x1xf32>
    %63 = vector.extract_strided_slice %3 {offsets = [0, 128], sizes = [2, 32], strides = [1, 1]} : vector<2x256xf32> to vector<2x32xf32>
    %64 = vector.broadcast %62 : vector<2x1xf32> to vector<2x32xf32>
    %65 = arith.mulf %64, %63 : vector<2x32xf32>
    %66 = arith.addf %61, %65 : vector<2x32xf32>
    %67 = vector.extract_strided_slice %1 {offsets = [0, 13], sizes = [2, 1], strides = [1, 1]} : vector<2x64xf32> to vector<2x1xf32>
    %68 = vector.extract_strided_slice %3 {offsets = [0, 160], sizes = [2, 32], strides = [1, 1]} : vector<2x256xf32> to vector<2x32xf32>
    %69 = vector.broadcast %67 : vector<2x1xf32> to vector<2x32xf32>
    %70 = arith.mulf %69, %68 : vector<2x32xf32>
    %71 = arith.addf %66, %70 : vector<2x32xf32>
    %72 = vector.extract_strided_slice %1 {offsets = [0, 14], sizes = [2, 1], strides = [1, 1]} : vector<2x64xf32> to vector<2x1xf32>
    %73 = vector.extract_strided_slice %3 {offsets = [0, 192], sizes = [2, 32], strides = [1, 1]} : vector<2x256xf32> to vector<2x32xf32>
    %74 = vector.broadcast %72 : vector<2x1xf32> to vector<2x32xf32>
    %75 = arith.mulf %74, %73 : vector<2x32xf32>
    %76 = arith.addf %71, %75 : vector<2x32xf32>
    %77 = vector.extract_strided_slice %1 {offsets = [0, 15], sizes = [2, 1], strides = [1, 1]} : vector<2x64xf32> to vector<2x1xf32>
    %78 = vector.extract_strided_slice %3 {offsets = [0, 224], sizes = [2, 32], strides = [1, 1]} : vector<2x256xf32> to vector<2x32xf32>
    %79 = vector.broadcast %77 : vector<2x1xf32> to vector<2x32xf32>
    %80 = arith.mulf %79, %78 : vector<2x32xf32>
    %81 = arith.addf %76, %80 : vector<2x32xf32>
    %82 = vector.extract_strided_slice %1 {offsets = [0, 16], sizes = [2, 1], strides = [1, 1]} : vector<2x64xf32> to vector<2x1xf32>
    %83 = vector.extract_strided_slice %3 {offsets = [0, 0], sizes = [2, 32], strides = [1, 1]} : vector<2x256xf32> to vector<2x32xf32>
    %84 = vector.broadcast %82 : vector<2x1xf32> to vector<2x32xf32>
    %85 = arith.mulf %84, %83 : vector<2x32xf32>
    %86 = vector.extract_strided_slice %1 {offsets = [0, 17], sizes = [2, 1], strides = [1, 1]} : vector<2x64xf32> to vector<2x1xf32>
    %87 = vector.extract_strided_slice %3 {offsets = [0, 32], sizes = [2, 32], strides = [1, 1]} : vector<2x256xf32> to vector<2x32xf32>
    %88 = vector.broadcast %86 : vector<2x1xf32> to vector<2x32xf32>
    %89 = arith.mulf %88, %87 : vector<2x32xf32>
    %90 = arith.addf %85, %89 : vector<2x32xf32>
    %91 = vector.extract_strided_slice %1 {offsets = [0, 18], sizes = [2, 1], strides = [1, 1]} : vector<2x64xf32> to vector<2x1xf32>
    %92 = vector.extract_strided_slice %3 {offsets = [0, 64], sizes = [2, 32], strides = [1, 1]} : vector<2x256xf32> to vector<2x32xf32>
    %93 = vector.broadcast %91 : vector<2x1xf32> to vector<2x32xf32>
    %94 = arith.mulf %93, %92 : vector<2x32xf32>
    %95 = arith.addf %90, %94 : vector<2x32xf32>
    %96 = vector.extract_strided_slice %1 {offsets = [0, 19], sizes = [2, 1], strides = [1, 1]} : vector<2x64xf32> to vector<2x1xf32>
    %97 = vector.extract_strided_slice %3 {offsets = [0, 96], sizes = [2, 32], strides = [1, 1]} : vector<2x256xf32> to vector<2x32xf32>
    %98 = vector.broadcast %96 : vector<2x1xf32> to vector<2x32xf32>
    %99 = arith.mulf %98, %97 : vector<2x32xf32>
    %100 = arith.addf %95, %99 : vector<2x32xf32>
    %101 = vector.extract_strided_slice %1 {offsets = [0, 20], sizes = [2, 1], strides = [1, 1]} : vector<2x64xf32> to vector<2x1xf32>
    %102 = vector.extract_strided_slice %3 {offsets = [0, 128], sizes = [2, 32], strides = [1, 1]} : vector<2x256xf32> to vector<2x32xf32>
    %103 = vector.broadcast %101 : vector<2x1xf32> to vector<2x32xf32>
    %104 = arith.mulf %103, %102 : vector<2x32xf32>
    %105 = arith.addf %100, %104 : vector<2x32xf32>
    %106 = vector.extract_strided_slice %1 {offsets = [0, 21], sizes = [2, 1], strides = [1, 1]} : vector<2x64xf32> to vector<2x1xf32>
    %107 = vector.extract_strided_slice %3 {offsets = [0, 160], sizes = [2, 32], strides = [1, 1]} : vector<2x256xf32> to vector<2x32xf32>
    %108 = vector.broadcast %106 : vector<2x1xf32> to vector<2x32xf32>
    %109 = arith.mulf %108, %107 : vector<2x32xf32>
    %110 = arith.addf %105, %109 : vector<2x32xf32>
    %111 = vector.extract_strided_slice %1 {offsets = [0, 22], sizes = [2, 1], strides = [1, 1]} : vector<2x64xf32> to vector<2x1xf32>
    %112 = vector.extract_strided_slice %3 {offsets = [0, 192], sizes = [2, 32], strides = [1, 1]} : vector<2x256xf32> to vector<2x32xf32>
    %113 = vector.broadcast %111 : vector<2x1xf32> to vector<2x32xf32>
    %114 = arith.mulf %113, %112 : vector<2x32xf32>
    %115 = arith.addf %110, %114 : vector<2x32xf32>
    %116 = vector.extract_strided_slice %1 {offsets = [0, 23], sizes = [2, 1], strides = [1, 1]} : vector<2x64xf32> to vector<2x1xf32>
    %117 = vector.extract_strided_slice %3 {offsets = [0, 224], sizes = [2, 32], strides = [1, 1]} : vector<2x256xf32> to vector<2x32xf32>
    %118 = vector.broadcast %116 : vector<2x1xf32> to vector<2x32xf32>
    %119 = arith.mulf %118, %117 : vector<2x32xf32>
    %120 = arith.addf %115, %119 : vector<2x32xf32>
    %121 = vector.extract_strided_slice %1 {offsets = [0, 24], sizes = [2, 1], strides = [1, 1]} : vector<2x64xf32> to vector<2x1xf32>
    %122 = vector.extract_strided_slice %3 {offsets = [0, 0], sizes = [2, 32], strides = [1, 1]} : vector<2x256xf32> to vector<2x32xf32>
    %123 = vector.broadcast %121 : vector<2x1xf32> to vector<2x32xf32>
    %124 = arith.mulf %123, %122 : vector<2x32xf32>
    %125 = vector.extract_strided_slice %1 {offsets = [0, 25], sizes = [2, 1], strides = [1, 1]} : vector<2x64xf32> to vector<2x1xf32>
    %126 = vector.extract_strided_slice %3 {offsets = [0, 32], sizes = [2, 32], strides = [1, 1]} : vector<2x256xf32> to vector<2x32xf32>
    %127 = vector.broadcast %125 : vector<2x1xf32> to vector<2x32xf32>
    %128 = arith.mulf %127, %126 : vector<2x32xf32>
    %129 = arith.addf %124, %128 : vector<2x32xf32>
    %130 = vector.extract_strided_slice %1 {offsets = [0, 26], sizes = [2, 1], strides = [1, 1]} : vector<2x64xf32> to vector<2x1xf32>
    %131 = vector.extract_strided_slice %3 {offsets = [0, 64], sizes = [2, 32], strides = [1, 1]} : vector<2x256xf32> to vector<2x32xf32>
    %132 = vector.broadcast %130 : vector<2x1xf32> to vector<2x32xf32>
    %133 = arith.mulf %132, %131 : vector<2x32xf32>
    %134 = arith.addf %129, %133 : vector<2x32xf32>
    %135 = vector.extract_strided_slice %1 {offsets = [0, 27], sizes = [2, 1], strides = [1, 1]} : vector<2x64xf32> to vector<2x1xf32>
    %136 = vector.extract_strided_slice %3 {offsets = [0, 96], sizes = [2, 32], strides = [1, 1]} : vector<2x256xf32> to vector<2x32xf32>
    %137 = vector.broadcast %135 : vector<2x1xf32> to vector<2x32xf32>
    %138 = arith.mulf %137, %136 : vector<2x32xf32>
    %139 = arith.addf %134, %138 : vector<2x32xf32>
    %140 = vector.extract_strided_slice %1 {offsets = [0, 28], sizes = [2, 1], strides = [1, 1]} : vector<2x64xf32> to vector<2x1xf32>
    %141 = vector.extract_strided_slice %3 {offsets = [0, 128], sizes = [2, 32], strides = [1, 1]} : vector<2x256xf32> to vector<2x32xf32>
    %142 = vector.broadcast %140 : vector<2x1xf32> to vector<2x32xf32>
    %143 = arith.mulf %142, %141 : vector<2x32xf32>
    %144 = arith.addf %139, %143 : vector<2x32xf32>
    %145 = vector.extract_strided_slice %1 {offsets = [0, 29], sizes = [2, 1], strides = [1, 1]} : vector<2x64xf32> to vector<2x1xf32>
    %146 = vector.extract_strided_slice %3 {offsets = [0, 160], sizes = [2, 32], strides = [1, 1]} : vector<2x256xf32> to vector<2x32xf32>
    %147 = vector.broadcast %145 : vector<2x1xf32> to vector<2x32xf32>
    %148 = arith.mulf %147, %146 : vector<2x32xf32>
    %149 = arith.addf %144, %148 : vector<2x32xf32>
    %150 = vector.extract_strided_slice %1 {offsets = [0, 30], sizes = [2, 1], strides = [1, 1]} : vector<2x64xf32> to vector<2x1xf32>
    %151 = vector.extract_strided_slice %3 {offsets = [0, 192], sizes = [2, 32], strides = [1, 1]} : vector<2x256xf32> to vector<2x32xf32>
    %152 = vector.broadcast %150 : vector<2x1xf32> to vector<2x32xf32>
    %153 = arith.mulf %152, %151 : vector<2x32xf32>
    %154 = arith.addf %149, %153 : vector<2x32xf32>
    %155 = vector.extract_strided_slice %1 {offsets = [0, 31], sizes = [2, 1], strides = [1, 1]} : vector<2x64xf32> to vector<2x1xf32>
    %156 = vector.extract_strided_slice %3 {offsets = [0, 224], sizes = [2, 32], strides = [1, 1]} : vector<2x256xf32> to vector<2x32xf32>
    %157 = vector.broadcast %155 : vector<2x1xf32> to vector<2x32xf32>
    %158 = arith.mulf %157, %156 : vector<2x32xf32>
    %159 = arith.addf %154, %158 : vector<2x32xf32>
    %160 = vector.extract_strided_slice %1 {offsets = [0, 32], sizes = [2, 1], strides = [1, 1]} : vector<2x64xf32> to vector<2x1xf32>
    %161 = vector.extract_strided_slice %3 {offsets = [0, 0], sizes = [2, 32], strides = [1, 1]} : vector<2x256xf32> to vector<2x32xf32>
    %162 = vector.broadcast %160 : vector<2x1xf32> to vector<2x32xf32>
    %163 = arith.mulf %162, %161 : vector<2x32xf32>
    %164 = vector.extract_strided_slice %1 {offsets = [0, 33], sizes = [2, 1], strides = [1, 1]} : vector<2x64xf32> to vector<2x1xf32>
    %165 = vector.extract_strided_slice %3 {offsets = [0, 32], sizes = [2, 32], strides = [1, 1]} : vector<2x256xf32> to vector<2x32xf32>
    %166 = vector.broadcast %164 : vector<2x1xf32> to vector<2x32xf32>
    %167 = arith.mulf %166, %165 : vector<2x32xf32>
    %168 = arith.addf %163, %167 : vector<2x32xf32>
    %169 = vector.extract_strided_slice %1 {offsets = [0, 34], sizes = [2, 1], strides = [1, 1]} : vector<2x64xf32> to vector<2x1xf32>
    %170 = vector.extract_strided_slice %3 {offsets = [0, 64], sizes = [2, 32], strides = [1, 1]} : vector<2x256xf32> to vector<2x32xf32>
    %171 = vector.broadcast %169 : vector<2x1xf32> to vector<2x32xf32>
    %172 = arith.mulf %171, %170 : vector<2x32xf32>
    %173 = arith.addf %168, %172 : vector<2x32xf32>
    %174 = vector.extract_strided_slice %1 {offsets = [0, 35], sizes = [2, 1], strides = [1, 1]} : vector<2x64xf32> to vector<2x1xf32>
    %175 = vector.extract_strided_slice %3 {offsets = [0, 96], sizes = [2, 32], strides = [1, 1]} : vector<2x256xf32> to vector<2x32xf32>
    %176 = vector.broadcast %174 : vector<2x1xf32> to vector<2x32xf32>
    %177 = arith.mulf %176, %175 : vector<2x32xf32>
    %178 = arith.addf %173, %177 : vector<2x32xf32>
    %179 = vector.extract_strided_slice %1 {offsets = [0, 36], sizes = [2, 1], strides = [1, 1]} : vector<2x64xf32> to vector<2x1xf32>
    %180 = vector.extract_strided_slice %3 {offsets = [0, 128], sizes = [2, 32], strides = [1, 1]} : vector<2x256xf32> to vector<2x32xf32>
    %181 = vector.broadcast %179 : vector<2x1xf32> to vector<2x32xf32>
    %182 = arith.mulf %181, %180 : vector<2x32xf32>
    %183 = arith.addf %178, %182 : vector<2x32xf32>
    %184 = vector.extract_strided_slice %1 {offsets = [0, 37], sizes = [2, 1], strides = [1, 1]} : vector<2x64xf32> to vector<2x1xf32>
    %185 = vector.extract_strided_slice %3 {offsets = [0, 160], sizes = [2, 32], strides = [1, 1]} : vector<2x256xf32> to vector<2x32xf32>
    %186 = vector.broadcast %184 : vector<2x1xf32> to vector<2x32xf32>
    %187 = arith.mulf %186, %185 : vector<2x32xf32>
    %188 = arith.addf %183, %187 : vector<2x32xf32>
    %189 = vector.extract_strided_slice %1 {offsets = [0, 38], sizes = [2, 1], strides = [1, 1]} : vector<2x64xf32> to vector<2x1xf32>
    %190 = vector.extract_strided_slice %3 {offsets = [0, 192], sizes = [2, 32], strides = [1, 1]} : vector<2x256xf32> to vector<2x32xf32>
    %191 = vector.broadcast %189 : vector<2x1xf32> to vector<2x32xf32>
    %192 = arith.mulf %191, %190 : vector<2x32xf32>
    %193 = arith.addf %188, %192 : vector<2x32xf32>
    %194 = vector.extract_strided_slice %1 {offsets = [0, 39], sizes = [2, 1], strides = [1, 1]} : vector<2x64xf32> to vector<2x1xf32>
    %195 = vector.extract_strided_slice %3 {offsets = [0, 224], sizes = [2, 32], strides = [1, 1]} : vector<2x256xf32> to vector<2x32xf32>
    %196 = vector.broadcast %194 : vector<2x1xf32> to vector<2x32xf32>
    %197 = arith.mulf %196, %195 : vector<2x32xf32>
    %198 = arith.addf %193, %197 : vector<2x32xf32>
    %199 = vector.extract_strided_slice %1 {offsets = [0, 40], sizes = [2, 1], strides = [1, 1]} : vector<2x64xf32> to vector<2x1xf32>
    %200 = vector.extract_strided_slice %3 {offsets = [0, 0], sizes = [2, 32], strides = [1, 1]} : vector<2x256xf32> to vector<2x32xf32>
    %201 = vector.broadcast %199 : vector<2x1xf32> to vector<2x32xf32>
    %202 = arith.mulf %201, %200 : vector<2x32xf32>
    %203 = vector.extract_strided_slice %1 {offsets = [0, 41], sizes = [2, 1], strides = [1, 1]} : vector<2x64xf32> to vector<2x1xf32>
    %204 = vector.extract_strided_slice %3 {offsets = [0, 32], sizes = [2, 32], strides = [1, 1]} : vector<2x256xf32> to vector<2x32xf32>
    %205 = vector.broadcast %203 : vector<2x1xf32> to vector<2x32xf32>
    %206 = arith.mulf %205, %204 : vector<2x32xf32>
    %207 = arith.addf %202, %206 : vector<2x32xf32>
    %208 = vector.extract_strided_slice %1 {offsets = [0, 42], sizes = [2, 1], strides = [1, 1]} : vector<2x64xf32> to vector<2x1xf32>
    %209 = vector.extract_strided_slice %3 {offsets = [0, 64], sizes = [2, 32], strides = [1, 1]} : vector<2x256xf32> to vector<2x32xf32>
    %210 = vector.broadcast %208 : vector<2x1xf32> to vector<2x32xf32>
    %211 = arith.mulf %210, %209 : vector<2x32xf32>
    %212 = arith.addf %207, %211 : vector<2x32xf32>
    %213 = vector.extract_strided_slice %1 {offsets = [0, 43], sizes = [2, 1], strides = [1, 1]} : vector<2x64xf32> to vector<2x1xf32>
    %214 = vector.extract_strided_slice %3 {offsets = [0, 96], sizes = [2, 32], strides = [1, 1]} : vector<2x256xf32> to vector<2x32xf32>
    %215 = vector.broadcast %213 : vector<2x1xf32> to vector<2x32xf32>
    %216 = arith.mulf %215, %214 : vector<2x32xf32>
    %217 = arith.addf %212, %216 : vector<2x32xf32>
    %218 = vector.extract_strided_slice %1 {offsets = [0, 44], sizes = [2, 1], strides = [1, 1]} : vector<2x64xf32> to vector<2x1xf32>
    %219 = vector.extract_strided_slice %3 {offsets = [0, 128], sizes = [2, 32], strides = [1, 1]} : vector<2x256xf32> to vector<2x32xf32>
    %220 = vector.broadcast %218 : vector<2x1xf32> to vector<2x32xf32>
    %221 = arith.mulf %220, %219 : vector<2x32xf32>
    %222 = arith.addf %217, %221 : vector<2x32xf32>
    %223 = vector.extract_strided_slice %1 {offsets = [0, 45], sizes = [2, 1], strides = [1, 1]} : vector<2x64xf32> to vector<2x1xf32>
    %224 = vector.extract_strided_slice %3 {offsets = [0, 160], sizes = [2, 32], strides = [1, 1]} : vector<2x256xf32> to vector<2x32xf32>
    %225 = vector.broadcast %223 : vector<2x1xf32> to vector<2x32xf32>
    %226 = arith.mulf %225, %224 : vector<2x32xf32>
    %227 = arith.addf %222, %226 : vector<2x32xf32>
    %228 = vector.extract_strided_slice %1 {offsets = [0, 46], sizes = [2, 1], strides = [1, 1]} : vector<2x64xf32> to vector<2x1xf32>
    %229 = vector.extract_strided_slice %3 {offsets = [0, 192], sizes = [2, 32], strides = [1, 1]} : vector<2x256xf32> to vector<2x32xf32>
    %230 = vector.broadcast %228 : vector<2x1xf32> to vector<2x32xf32>
    %231 = arith.mulf %230, %229 : vector<2x32xf32>
    %232 = arith.addf %227, %231 : vector<2x32xf32>
    %233 = vector.extract_strided_slice %1 {offsets = [0, 47], sizes = [2, 1], strides = [1, 1]} : vector<2x64xf32> to vector<2x1xf32>
    %234 = vector.extract_strided_slice %3 {offsets = [0, 224], sizes = [2, 32], strides = [1, 1]} : vector<2x256xf32> to vector<2x32xf32>
    %235 = vector.broadcast %233 : vector<2x1xf32> to vector<2x32xf32>
    %236 = arith.mulf %235, %234 : vector<2x32xf32>
    %237 = arith.addf %232, %236 : vector<2x32xf32>
    %238 = vector.extract_strided_slice %1 {offsets = [0, 48], sizes = [2, 1], strides = [1, 1]} : vector<2x64xf32> to vector<2x1xf32>
    %239 = vector.extract_strided_slice %3 {offsets = [0, 0], sizes = [2, 32], strides = [1, 1]} : vector<2x256xf32> to vector<2x32xf32>
    %240 = vector.broadcast %238 : vector<2x1xf32> to vector<2x32xf32>
    %241 = arith.mulf %240, %239 : vector<2x32xf32>
    %242 = vector.extract_strided_slice %1 {offsets = [0, 49], sizes = [2, 1], strides = [1, 1]} : vector<2x64xf32> to vector<2x1xf32>
    %243 = vector.extract_strided_slice %3 {offsets = [0, 32], sizes = [2, 32], strides = [1, 1]} : vector<2x256xf32> to vector<2x32xf32>
    %244 = vector.broadcast %242 : vector<2x1xf32> to vector<2x32xf32>
    %245 = arith.mulf %244, %243 : vector<2x32xf32>
    %246 = arith.addf %241, %245 : vector<2x32xf32>
    %247 = vector.extract_strided_slice %1 {offsets = [0, 50], sizes = [2, 1], strides = [1, 1]} : vector<2x64xf32> to vector<2x1xf32>
    %248 = vector.extract_strided_slice %3 {offsets = [0, 64], sizes = [2, 32], strides = [1, 1]} : vector<2x256xf32> to vector<2x32xf32>
    %249 = vector.broadcast %247 : vector<2x1xf32> to vector<2x32xf32>
    %250 = arith.mulf %249, %248 : vector<2x32xf32>
    %251 = arith.addf %246, %250 : vector<2x32xf32>
    %252 = vector.extract_strided_slice %1 {offsets = [0, 51], sizes = [2, 1], strides = [1, 1]} : vector<2x64xf32> to vector<2x1xf32>
    %253 = vector.extract_strided_slice %3 {offsets = [0, 96], sizes = [2, 32], strides = [1, 1]} : vector<2x256xf32> to vector<2x32xf32>
    %254 = vector.broadcast %252 : vector<2x1xf32> to vector<2x32xf32>
    %255 = arith.mulf %254, %253 : vector<2x32xf32>
    %256 = arith.addf %251, %255 : vector<2x32xf32>
    %257 = vector.extract_strided_slice %1 {offsets = [0, 52], sizes = [2, 1], strides = [1, 1]} : vector<2x64xf32> to vector<2x1xf32>
    %258 = vector.extract_strided_slice %3 {offsets = [0, 128], sizes = [2, 32], strides = [1, 1]} : vector<2x256xf32> to vector<2x32xf32>
    %259 = vector.broadcast %257 : vector<2x1xf32> to vector<2x32xf32>
    %260 = arith.mulf %259, %258 : vector<2x32xf32>
    %261 = arith.addf %256, %260 : vector<2x32xf32>
    %262 = vector.extract_strided_slice %1 {offsets = [0, 53], sizes = [2, 1], strides = [1, 1]} : vector<2x64xf32> to vector<2x1xf32>
    %263 = vector.extract_strided_slice %3 {offsets = [0, 160], sizes = [2, 32], strides = [1, 1]} : vector<2x256xf32> to vector<2x32xf32>
    %264 = vector.broadcast %262 : vector<2x1xf32> to vector<2x32xf32>
    %265 = arith.mulf %264, %263 : vector<2x32xf32>
    %266 = arith.addf %261, %265 : vector<2x32xf32>
    %267 = vector.extract_strided_slice %1 {offsets = [0, 54], sizes = [2, 1], strides = [1, 1]} : vector<2x64xf32> to vector<2x1xf32>
    %268 = vector.extract_strided_slice %3 {offsets = [0, 192], sizes = [2, 32], strides = [1, 1]} : vector<2x256xf32> to vector<2x32xf32>
    %269 = vector.broadcast %267 : vector<2x1xf32> to vector<2x32xf32>
    %270 = arith.mulf %269, %268 : vector<2x32xf32>
    %271 = arith.addf %266, %270 : vector<2x32xf32>
    %272 = vector.extract_strided_slice %1 {offsets = [0, 55], sizes = [2, 1], strides = [1, 1]} : vector<2x64xf32> to vector<2x1xf32>
    %273 = vector.extract_strided_slice %3 {offsets = [0, 224], sizes = [2, 32], strides = [1, 1]} : vector<2x256xf32> to vector<2x32xf32>
    %274 = vector.broadcast %272 : vector<2x1xf32> to vector<2x32xf32>
    %275 = arith.mulf %274, %273 : vector<2x32xf32>
    %276 = arith.addf %271, %275 : vector<2x32xf32>
    %277 = vector.extract_strided_slice %1 {offsets = [0, 56], sizes = [2, 1], strides = [1, 1]} : vector<2x64xf32> to vector<2x1xf32>
    %278 = vector.extract_strided_slice %3 {offsets = [0, 0], sizes = [2, 32], strides = [1, 1]} : vector<2x256xf32> to vector<2x32xf32>
    %279 = vector.broadcast %277 : vector<2x1xf32> to vector<2x32xf32>
    %280 = arith.mulf %279, %278 : vector<2x32xf32>
    %281 = vector.extract_strided_slice %1 {offsets = [0, 57], sizes = [2, 1], strides = [1, 1]} : vector<2x64xf32> to vector<2x1xf32>
    %282 = vector.extract_strided_slice %3 {offsets = [0, 32], sizes = [2, 32], strides = [1, 1]} : vector<2x256xf32> to vector<2x32xf32>
    %283 = vector.broadcast %281 : vector<2x1xf32> to vector<2x32xf32>
    %284 = arith.mulf %283, %282 : vector<2x32xf32>
    %285 = arith.addf %280, %284 : vector<2x32xf32>
    %286 = vector.extract_strided_slice %1 {offsets = [0, 58], sizes = [2, 1], strides = [1, 1]} : vector<2x64xf32> to vector<2x1xf32>
    %287 = vector.extract_strided_slice %3 {offsets = [0, 64], sizes = [2, 32], strides = [1, 1]} : vector<2x256xf32> to vector<2x32xf32>
    %288 = vector.broadcast %286 : vector<2x1xf32> to vector<2x32xf32>
    %289 = arith.mulf %288, %287 : vector<2x32xf32>
    %290 = arith.addf %285, %289 : vector<2x32xf32>
    %291 = vector.extract_strided_slice %1 {offsets = [0, 59], sizes = [2, 1], strides = [1, 1]} : vector<2x64xf32> to vector<2x1xf32>
    %292 = vector.extract_strided_slice %3 {offsets = [0, 96], sizes = [2, 32], strides = [1, 1]} : vector<2x256xf32> to vector<2x32xf32>
    %293 = vector.broadcast %291 : vector<2x1xf32> to vector<2x32xf32>
    %294 = arith.mulf %293, %292 : vector<2x32xf32>
    %295 = arith.addf %290, %294 : vector<2x32xf32>
    %296 = vector.extract_strided_slice %1 {offsets = [0, 60], sizes = [2, 1], strides = [1, 1]} : vector<2x64xf32> to vector<2x1xf32>
    %297 = vector.extract_strided_slice %3 {offsets = [0, 128], sizes = [2, 32], strides = [1, 1]} : vector<2x256xf32> to vector<2x32xf32>
    %298 = vector.broadcast %296 : vector<2x1xf32> to vector<2x32xf32>
    %299 = arith.mulf %298, %297 : vector<2x32xf32>
    %300 = arith.addf %295, %299 : vector<2x32xf32>
    %301 = vector.extract_strided_slice %1 {offsets = [0, 61], sizes = [2, 1], strides = [1, 1]} : vector<2x64xf32> to vector<2x1xf32>
    %302 = vector.extract_strided_slice %3 {offsets = [0, 160], sizes = [2, 32], strides = [1, 1]} : vector<2x256xf32> to vector<2x32xf32>
    %303 = vector.broadcast %301 : vector<2x1xf32> to vector<2x32xf32>
    %304 = arith.mulf %303, %302 : vector<2x32xf32>
    %305 = arith.addf %300, %304 : vector<2x32xf32>
    %306 = vector.extract_strided_slice %1 {offsets = [0, 62], sizes = [2, 1], strides = [1, 1]} : vector<2x64xf32> to vector<2x1xf32>
    %307 = vector.extract_strided_slice %3 {offsets = [0, 192], sizes = [2, 32], strides = [1, 1]} : vector<2x256xf32> to vector<2x32xf32>
    %308 = vector.broadcast %306 : vector<2x1xf32> to vector<2x32xf32>
    %309 = arith.mulf %308, %307 : vector<2x32xf32>
    %310 = arith.addf %305, %309 : vector<2x32xf32>
    %311 = vector.extract_strided_slice %1 {offsets = [0, 63], sizes = [2, 1], strides = [1, 1]} : vector<2x64xf32> to vector<2x1xf32>
    %312 = vector.extract_strided_slice %3 {offsets = [0, 224], sizes = [2, 32], strides = [1, 1]} : vector<2x256xf32> to vector<2x32xf32>
    %313 = vector.broadcast %311 : vector<2x1xf32> to vector<2x32xf32>
    %314 = arith.mulf %313, %312 : vector<2x32xf32>
    %315 = arith.addf %310, %314 : vector<2x32xf32>
    %316 = tpu.concatenate %42, %81, %120, %159, %198, %237, %276, %315 in 1 : vector<2x32xf32>, vector<2x32xf32>, vector<2x32xf32>, vector<2x32xf32>, vector<2x32xf32>, vector<2x32xf32>, vector<2x32xf32>, vector<2x32xf32> -> vector<2x256xf32>
    %c0_5 = arith.constant 0 : index
    %c0_6 = arith.constant 0 : index
    %317 = vector.load %arg4[%c0_5, %c0_6] : memref<1x256xf32, #tpu.memory_space<vmem>>, vector<1x256xf32>
    %318 = vector.broadcast %317 : vector<1x256xf32> to vector<2x256xf32>
    %319 = arith.addf %316, %318 : vector<2x256xf32>
    %cst_7 = arith.constant 0.000000e+00 : f32
    %320 = vector.broadcast %cst_7 : f32 to vector<2x256xf32>
    %321 = arith.maximumf %319, %320 : vector<2x256xf32>
    %c0_8 = arith.constant 0 : index
    %c0_9 = arith.constant 0 : index
    %322 = vector.load %arg5[%c0_8, %c0_9] : memref<256x128xf32, #tpu.memory_space<vmem>>, vector<256x128xf32>
    %cst_10 = arith.constant dense<0.000000e+00> : vector<2x128xf32>
    %323 = tpu.matmul %321, %322, %cst_10 {dimension_numbers = #tpu.dot_dimension_numbers<[1], [0], [0], [1], [0, 0, 1, 1], [], []>} : vector<2x256xf32>, vector<256x128xf32>, vector<2x128xf32> -> vector<2x128xf32>
    %c0_11 = arith.constant 0 : index
    %c0_12 = arith.constant 0 : index
    %324 = vector.load %arg6[%c0_11, %c0_12] : memref<64x16xf32, #tpu.memory_space<vmem>>, vector<64x16xf32>
    %cst_13 = arith.constant dense<0.000000e+00> : vector<2x16xf32>
    %325 = tpu.matmul %1, %324, %cst_13 {dimension_numbers = #tpu.dot_dimension_numbers<[1], [0], [0], [1], [0, 0, 1, 1], [], []>} : vector<2x64xf32>, vector<64x16xf32>, vector<2x16xf32> -> vector<2x16xf32>
    %c0_14 = arith.constant 0 : index
    %c0_15 = arith.constant 0 : index
    %326 = vector.load %arg7[%c0_14, %c0_15] : memref<1x32xf32, #tpu.memory_space<vmem>>, vector<1x32xf32>
    %327 = vector.extract_strided_slice %325 {offsets = [0, 0], sizes = [2, 1], strides = [1, 1]} : vector<2x16xf32> to vector<2x1xf32>
    %328 = vector.extract_strided_slice %323 {offsets = [0, 0], sizes = [2, 16], strides = [1, 1]} : vector<2x128xf32> to vector<2x16xf32>
    %329 = vector.broadcast %327 : vector<2x1xf32> to vector<2x16xf32>
    %330 = arith.mulf %329, %328 : vector<2x16xf32>
    %331 = vector.extract_strided_slice %326 {offsets = [0, 0], sizes = [1, 16], strides = [1, 1]} : vector<1x32xf32> to vector<1x16xf32>
    %332 = vector.broadcast %331 : vector<1x16xf32> to vector<2x16xf32>
    %333 = arith.addf %330, %332 : vector<2x16xf32>
    %334 = vector.extract_strided_slice %325 {offsets = [0, 1], sizes = [2, 1], strides = [1, 1]} : vector<2x16xf32> to vector<2x1xf32>
    %335 = vector.extract_strided_slice %323 {offsets = [0, 16], sizes = [2, 16], strides = [1, 1]} : vector<2x128xf32> to vector<2x16xf32>
    %336 = vector.broadcast %334 : vector<2x1xf32> to vector<2x16xf32>
    %337 = arith.mulf %336, %335 : vector<2x16xf32>
    %338 = arith.addf %333, %337 : vector<2x16xf32>
    %339 = vector.extract_strided_slice %325 {offsets = [0, 2], sizes = [2, 1], strides = [1, 1]} : vector<2x16xf32> to vector<2x1xf32>
    %340 = vector.extract_strided_slice %323 {offsets = [0, 32], sizes = [2, 16], strides = [1, 1]} : vector<2x128xf32> to vector<2x16xf32>
    %341 = vector.broadcast %339 : vector<2x1xf32> to vector<2x16xf32>
    %342 = arith.mulf %341, %340 : vector<2x16xf32>
    %343 = arith.addf %338, %342 : vector<2x16xf32>
    %344 = vector.extract_strided_slice %325 {offsets = [0, 3], sizes = [2, 1], strides = [1, 1]} : vector<2x16xf32> to vector<2x1xf32>
    %345 = vector.extract_strided_slice %323 {offsets = [0, 48], sizes = [2, 16], strides = [1, 1]} : vector<2x128xf32> to vector<2x16xf32>
    %346 = vector.broadcast %344 : vector<2x1xf32> to vector<2x16xf32>
    %347 = arith.mulf %346, %345 : vector<2x16xf32>
    %348 = arith.addf %343, %347 : vector<2x16xf32>
    %349 = vector.extract_strided_slice %325 {offsets = [0, 4], sizes = [2, 1], strides = [1, 1]} : vector<2x16xf32> to vector<2x1xf32>
    %350 = vector.extract_strided_slice %323 {offsets = [0, 64], sizes = [2, 16], strides = [1, 1]} : vector<2x128xf32> to vector<2x16xf32>
    %351 = vector.broadcast %349 : vector<2x1xf32> to vector<2x16xf32>
    %352 = arith.mulf %351, %350 : vector<2x16xf32>
    %353 = arith.addf %348, %352 : vector<2x16xf32>
    %354 = vector.extract_strided_slice %325 {offsets = [0, 5], sizes = [2, 1], strides = [1, 1]} : vector<2x16xf32> to vector<2x1xf32>
    %355 = vector.extract_strided_slice %323 {offsets = [0, 80], sizes = [2, 16], strides = [1, 1]} : vector<2x128xf32> to vector<2x16xf32>
    %356 = vector.broadcast %354 : vector<2x1xf32> to vector<2x16xf32>
    %357 = arith.mulf %356, %355 : vector<2x16xf32>
    %358 = arith.addf %353, %357 : vector<2x16xf32>
    %359 = vector.extract_strided_slice %325 {offsets = [0, 6], sizes = [2, 1], strides = [1, 1]} : vector<2x16xf32> to vector<2x1xf32>
    %360 = vector.extract_strided_slice %323 {offsets = [0, 96], sizes = [2, 16], strides = [1, 1]} : vector<2x128xf32> to vector<2x16xf32>
    %361 = vector.broadcast %359 : vector<2x1xf32> to vector<2x16xf32>
    %362 = arith.mulf %361, %360 : vector<2x16xf32>
    %363 = arith.addf %358, %362 : vector<2x16xf32>
    %364 = vector.extract_strided_slice %325 {offsets = [0, 7], sizes = [2, 1], strides = [1, 1]} : vector<2x16xf32> to vector<2x1xf32>
    %365 = vector.extract_strided_slice %323 {offsets = [0, 112], sizes = [2, 16], strides = [1, 1]} : vector<2x128xf32> to vector<2x16xf32>
    %366 = vector.broadcast %364 : vector<2x1xf32> to vector<2x16xf32>
    %367 = arith.mulf %366, %365 : vector<2x16xf32>
    %368 = arith.addf %363, %367 : vector<2x16xf32>
    %369 = vector.extract_strided_slice %325 {offsets = [0, 8], sizes = [2, 1], strides = [1, 1]} : vector<2x16xf32> to vector<2x1xf32>
    %370 = vector.extract_strided_slice %323 {offsets = [0, 0], sizes = [2, 16], strides = [1, 1]} : vector<2x128xf32> to vector<2x16xf32>
    %371 = vector.broadcast %369 : vector<2x1xf32> to vector<2x16xf32>
    %372 = arith.mulf %371, %370 : vector<2x16xf32>
    %373 = vector.extract_strided_slice %326 {offsets = [0, 16], sizes = [1, 16], strides = [1, 1]} : vector<1x32xf32> to vector<1x16xf32>
    %374 = vector.broadcast %373 : vector<1x16xf32> to vector<2x16xf32>
    %375 = arith.addf %372, %374 : vector<2x16xf32>
    %376 = vector.extract_strided_slice %325 {offsets = [0, 9], sizes = [2, 1], strides = [1, 1]} : vector<2x16xf32> to vector<2x1xf32>
    %377 = vector.extract_strided_slice %323 {offsets = [0, 16], sizes = [2, 16], strides = [1, 1]} : vector<2x128xf32> to vector<2x16xf32>
    %378 = vector.broadcast %376 : vector<2x1xf32> to vector<2x16xf32>
    %379 = arith.mulf %378, %377 : vector<2x16xf32>
    %380 = arith.addf %375, %379 : vector<2x16xf32>
    %381 = vector.extract_strided_slice %325 {offsets = [0, 10], sizes = [2, 1], strides = [1, 1]} : vector<2x16xf32> to vector<2x1xf32>
    %382 = vector.extract_strided_slice %323 {offsets = [0, 32], sizes = [2, 16], strides = [1, 1]} : vector<2x128xf32> to vector<2x16xf32>
    %383 = vector.broadcast %381 : vector<2x1xf32> to vector<2x16xf32>
    %384 = arith.mulf %383, %382 : vector<2x16xf32>
    %385 = arith.addf %380, %384 : vector<2x16xf32>
    %386 = vector.extract_strided_slice %325 {offsets = [0, 11], sizes = [2, 1], strides = [1, 1]} : vector<2x16xf32> to vector<2x1xf32>
    %387 = vector.extract_strided_slice %323 {offsets = [0, 48], sizes = [2, 16], strides = [1, 1]} : vector<2x128xf32> to vector<2x16xf32>
    %388 = vector.broadcast %386 : vector<2x1xf32> to vector<2x16xf32>
    %389 = arith.mulf %388, %387 : vector<2x16xf32>
    %390 = arith.addf %385, %389 : vector<2x16xf32>
    %391 = vector.extract_strided_slice %325 {offsets = [0, 12], sizes = [2, 1], strides = [1, 1]} : vector<2x16xf32> to vector<2x1xf32>
    %392 = vector.extract_strided_slice %323 {offsets = [0, 64], sizes = [2, 16], strides = [1, 1]} : vector<2x128xf32> to vector<2x16xf32>
    %393 = vector.broadcast %391 : vector<2x1xf32> to vector<2x16xf32>
    %394 = arith.mulf %393, %392 : vector<2x16xf32>
    %395 = arith.addf %390, %394 : vector<2x16xf32>
    %396 = vector.extract_strided_slice %325 {offsets = [0, 13], sizes = [2, 1], strides = [1, 1]} : vector<2x16xf32> to vector<2x1xf32>
    %397 = vector.extract_strided_slice %323 {offsets = [0, 80], sizes = [2, 16], strides = [1, 1]} : vector<2x128xf32> to vector<2x16xf32>
    %398 = vector.broadcast %396 : vector<2x1xf32> to vector<2x16xf32>
    %399 = arith.mulf %398, %397 : vector<2x16xf32>
    %400 = arith.addf %395, %399 : vector<2x16xf32>
    %401 = vector.extract_strided_slice %325 {offsets = [0, 14], sizes = [2, 1], strides = [1, 1]} : vector<2x16xf32> to vector<2x1xf32>
    %402 = vector.extract_strided_slice %323 {offsets = [0, 96], sizes = [2, 16], strides = [1, 1]} : vector<2x128xf32> to vector<2x16xf32>
    %403 = vector.broadcast %401 : vector<2x1xf32> to vector<2x16xf32>
    %404 = arith.mulf %403, %402 : vector<2x16xf32>
    %405 = arith.addf %400, %404 : vector<2x16xf32>
    %406 = vector.extract_strided_slice %325 {offsets = [0, 15], sizes = [2, 1], strides = [1, 1]} : vector<2x16xf32> to vector<2x1xf32>
    %407 = vector.extract_strided_slice %323 {offsets = [0, 112], sizes = [2, 16], strides = [1, 1]} : vector<2x128xf32> to vector<2x16xf32>
    %408 = vector.broadcast %406 : vector<2x1xf32> to vector<2x16xf32>
    %409 = arith.mulf %408, %407 : vector<2x16xf32>
    %410 = arith.addf %405, %409 : vector<2x16xf32>
    %411 = tpu.concatenate %368, %410 in 1 : vector<2x16xf32>, vector<2x16xf32> -> vector<2x32xf32>
    %c0_16 = arith.constant 0 : index
    %c0_17 = arith.constant 0 : index
    %412 = vector.load %arg8[%c0_16, %c0_17] : memref<2x32xf32, #tpu.memory_space<vmem>>, vector<2x32xf32>
    tpu.vector_store %arg8[%c0_16, %c0_17], %411 {strides = array<i32>} : memref<2x32xf32, #tpu.memory_space<vmem>>, vector<2x32xf32>,
    return
  }
  func.func @transform_0(%arg0: i32) -> (i32, i32) {
    %c0_i32 = arith.constant 0 : i32
    %c0_i32_0 = arith.constant 0 : i32
    return %arg0, %c0_i32 : i32, i32
  }
  func.func @transform_1(%arg0: i32) -> (i32, i32) {
    %c0_i32 = arith.constant 0 : i32
    %c0_i32_0 = arith.constant 0 : i32
    return %arg0, %c0_i32 : i32, i32
  }
  func.func @transform_2(%arg0: i32) -> (i32, i32) {
    %c0_i32 = arith.constant 0 : i32
    %c0_i32_0 = arith.constant 0 : i32
    %c0_i32_1 = arith.constant 0 : i32
    return %c0_i32, %c0_i32_0 : i32, i32
  }
  func.func @transform_3(%arg0: i32) -> (i32, i32) {
    %c0_i32 = arith.constant 0 : i32
    %c0_i32_0 = arith.constant 0 : i32
    %c0_i32_1 = arith.constant 0 : i32
    return %c0_i32, %c0_i32_0 : i32, i32
  }
  func.func @transform_4(%arg0: i32) -> (i32, i32) {
    %c0_i32 = arith.constant 0 : i32
    %c0_i32_0 = arith.constant 0 : i32
    %c0_i32_1 = arith.constant 0 : i32
    return %c0_i32, %c0_i32_0 : i32, i32
  }
  func.func @transform_5(%arg0: i32) -> (i32, i32) {
    %c0_i32 = arith.constant 0 : i32
    %c0_i32_0 = arith.constant 0 : i32
    %c0_i32_1 = arith.constant 0 : i32
    return %c0_i32, %c0_i32_0 : i32, i32
  }
  func.func @transform_6(%arg0: i32) -> (i32, i32) {
    %c0_i32 = arith.constant 0 : i32
    %c0_i32_0 = arith.constant 0 : i32
    %c0_i32_1 = arith.constant 0 : i32
    return %c0_i32, %c0_i32_0 : i32, i32
  }
  func.func @transform_7(%arg0: i32) -> (i32, i32) {
    %c0_i32 = arith.constant 0 : i32
    %c0_i32_0 = arith.constant 0 : i32
    return %arg0, %c0_i32 : i32, i32
  }
}

</mosaic_0001>

<llo_original>
// kernel: tile.8
$region0: #{tile.8}
  #allocation0 [shape = 's32[1]{0}', space=sflag, size = 0x4, scoped, tag = 'scoped memory for tile.8']
  %s0 = inlined_call_operand.vmem [shape: f32[32], index: 0, kind: input, shape index: {}]
  %s1 = inlined_call_operand.vmem [shape: f32[8,32], index: 1, kind: output, shape index: {}]
  // Predicated region
  $region2: #{tile.8} parent=0 // pred_check
    _
  $region3: #{tile.8} parent=0 // pred_check_branch
    %3 = sbr.rel (0) target = $region5
  $region4: #{tile.8} parent=0 // pred_region
    _
  $region5: #{tile.8} parent=0 // pred_fallthru
    _
  %v4 = vld [vmem:[%s0] ss:$0 sm:$0xff]
  %5 = vst [vmem:[%s1] sm:$0xff] %v4

// kernel: tile.9
$region0: #{tile.9}
  %s0 = inlined_call_operand.vmem [shape: f32[8,32], index: 0, kind: input, shape index: {}]
  %s1 = inlined_call_operand.vmem [shape: f32[1,256], index: 1, kind: output, shape index: {}]
  $region1: #{tile.9} parent=0
    #allocation0 [shape = 'u8[8192]{0}', space=vmem, size = 0x2000, scoped, tag = 'scoped mem for output reshape']
    %s2 = smov 3
    %v3 = vld [vmem:[%s0] ss:$4 sm:%s2]
    %vm4 = vcmask 261120
    %5 = vst.msk [vmem:[#allocation0] ss:$8 sm:$0x3] %vm4, %v3
    %s6 = scalar_lea.vmem %s0, 3
    %s7 = smov 3
    %v8 = vld [vmem:[%s6] ss:$4 sm:%s7]
    %9 = vrot.lane.b32.xlu0 %v8, 96
    %v10 = vpop.permute.xlu0 %9
    %vm11 = vcmask 1048320
    %12 = vst.msk [vmem:[#allocation0] ss:$8 sm:$0x3] %vm11, %v10
    %s13 = scalar_lea.vmem %s0, 2
    %s14 = smov 3
    %v15 = vld [vmem:[%s13] ss:$4 sm:%s14]
    %16 = vrot.lane.b32.xlu0 %v15, 64
    %v17 = vpop.permute.xlu0 %16
    %vm18 = vcmask 785920
    %19 = vst.msk [vmem:[#allocation0] ss:$8 sm:$0x3] %vm18, %v17
    %s20 = scalar_lea.vmem %s0, 1
    %s21 = smov 3
    %v22 = vld [vmem:[%s20] ss:$4 sm:%s21]
    %23 = vrot.lane.b32.xlu0 %v22, 32
    %v24 = vpop.permute.xlu0 %23
    %vm25 = vcmask 523520
    %26 = vst.msk [vmem:[#allocation0] ss:$8 sm:$0x3] %vm25, %v24
    %s28 = sshllo.u32 0, 1
    %v30 = vld [vmem:[#allocation0] sm:%s28]
    %s31 = sshllo.u32 0, 1
    %32 = vst [vmem:[%s1] sm:%s31] %v30
    %s33 = scalar_lea.vmem [#allocation0], 8
    %v34 = vld [vmem:[%s33] sm:%s28]
    %s35 = sshllo.u32 0, 1
    %s36 = scalar_lea.vmem %s1, 1
    %37 = vst [vmem:[%s36] sm:%s35] %v34

// kernel: graph_encoder_forward.1
$region0: #{graph_encoder_forward.1}
  #allocation0 [shape = 'u32[]', space=smem, size = 0x4, offset = 0x4, fixed_abs, tag = 'smem constant byte address 0x4 - core index']
  #allocation1 [shape = 'u32[144,128]{1,0:T(1,128)}', space=vmem, size = 0x12000, scoped, tag = 'internal scratch']
  %s0 = inlined_call_operand.vmem [shape: f32[2,128], index: 0, kind: input, shape index: {}]
  %s1 = inlined_call_operand.vmem [shape: f32[2,64], index: 1, kind: input, shape index: {}]
  %s2 = inlined_call_operand.vmem [shape: f32[128,256], index: 2, kind: input, shape index: {}]
  %s3 = inlined_call_operand.vmem [shape: f32[1,256], index: 3, kind: input, shape index: {}]
  %s4 = inlined_call_operand.vmem [shape: f32[256,128], index: 4, kind: input, shape index: {}]
  %s5 = inlined_call_operand.vmem [shape: f32[64,16], index: 5, kind: input, shape index: {}]
  %s6 = inlined_call_operand.vmem [shape: f32[1,32], index: 6, kind: input, shape index: {}]
  %s7 = inlined_call_operand.vmem [shape: f32[2,32], index: 7, kind: output, shape index: {}]
  %s8 = sld [smem:[#allocation0]]
  $region38: #{graph_encoder_forward.1} parent=0
    _
  %s10 = ssub.s32 1, %s8
  %s11 = scalar_select 0, %s10, %s8
  // Predicated region
  $region2: #{graph_encoder_forward.1} parent=0 // pred_check
    _
  $region3: #{graph_encoder_forward.1} parent=0 // pred_check_branch
    %13 = sbr.rel (0) target = $region5
  $region4: #{graph_encoder_forward.1} parent=0 // pred_region
    _
  $region5: #{graph_encoder_forward.1} parent=0 // pred_fallthru
    _
  // Predicated region
  $region6: #{graph_encoder_forward.1} parent=0 // pred_check
    _
  $region7: #{graph_encoder_forward.1} parent=0 // pred_check_branch
    %15 = sbr.rel (0) target = $region9
  $region8: #{graph_encoder_forward.1} parent=0 // pred_region
    _
  $region9: #{graph_encoder_forward.1} parent=0 // pred_fallthru
    _
  // Predicated region
  $region10: #{graph_encoder_forward.1} parent=0 // pred_check
    _
  $region11: #{graph_encoder_forward.1} parent=0 // pred_check_branch
    %17 = sbr.rel (0) target = $region13
  $region12: #{graph_encoder_forward.1} parent=0 // pred_region
    _
  $region13: #{graph_encoder_forward.1} parent=0 // pred_fallthru
    _
  // Predicated region
  $region14: #{graph_encoder_forward.1} parent=0 // pred_check
    _
  $region15: #{graph_encoder_forward.1} parent=0 // pred_check_branch
    %19 = sbr.rel (0) target = $region17
  $region16: #{graph_encoder_forward.1} parent=0 // pred_region
    _
  $region17: #{graph_encoder_forward.1} parent=0 // pred_fallthru
    _
  // Predicated region
  $region18: #{graph_encoder_forward.1} parent=0 // pred_check
    _
  $region19: #{graph_encoder_forward.1} parent=0 // pred_check_branch
    %21 = sbr.rel (0) target = $region21
  $region20: #{graph_encoder_forward.1} parent=0 // pred_region
    _
  $region21: #{graph_encoder_forward.1} parent=0 // pred_fallthru
    _
  // Predicated region
  $region22: #{graph_encoder_forward.1} parent=0 // pred_check
    _
  $region23: #{graph_encoder_forward.1} parent=0 // pred_check_branch
    %23 = sbr.rel (0) target = $region25
  $region24: #{graph_encoder_forward.1} parent=0 // pred_region
    _
  $region25: #{graph_encoder_forward.1} parent=0 // pred_fallthru
    _
  // Predicated region
  $region26: #{graph_encoder_forward.1} parent=0 // pred_check
    _
  $region27: #{graph_encoder_forward.1} parent=0 // pred_check_branch
    %25 = sbr.rel (0) target = $region29
  $region28: #{graph_encoder_forward.1} parent=0 // pred_region
    _
  $region29: #{graph_encoder_forward.1} parent=0 // pred_fallthru
    _
  %v26 = vld [vmem:[%s0] sm:$0x3]
  %v27 = vld [vmem:[%s1] sm:$0x3]
  %v28 = vld [vmem:[%s2] sm:$0xff]
  %v29 = vld [vmem:[%s2 + $0x8] sm:$0xff]
  %v30 = vld [vmem:[%s2 + $0x10] sm:$0xff]
  %v31 = vld [vmem:[%s2 + $0x18] sm:$0xff]
  %v32 = vld [vmem:[%s2 + $0x20] sm:$0xff]
  %v33 = vld [vmem:[%s2 + $0x28] sm:$0xff]
  %v34 = vld [vmem:[%s2 + $0x30] sm:$0xff]
  %v35 = vld [vmem:[%s2 + $0x38] sm:$0xff]
  %v36 = vld [vmem:[%s2 + $0x40] sm:$0xff]
  %v37 = vld [vmem:[%s2 + $0x48] sm:$0xff]
  %v38 = vld [vmem:[%s2 + $0x50] sm:$0xff]
  %v39 = vld [vmem:[%s2 + $0x58] sm:$0xff]
  %v40 = vld [vmem:[%s2 + $0x60] sm:$0xff]
  %v41 = vld [vmem:[%s2 + $0x68] sm:$0xff]
  %v42 = vld [vmem:[%s2 + $0x70] sm:$0xff]
  %v43 = vld [vmem:[%s2 + $0x78] sm:$0xff]
  %v44 = vld [vmem:[%s2 + $0x80] sm:$0xff]
  %v45 = vld [vmem:[%s2 + $0x88] sm:$0xff]
  %v46 = vld [vmem:[%s2 + $0x90] sm:$0xff]
  %v47 = vld [vmem:[%s2 + $0x98] sm:$0xff]
  %v48 = vld [vmem:[%s2 + $0xa0] sm:$0xff]
  %v49 = vld [vmem:[%s2 + $0xa8] sm:$0xff]
  %v50 = vld [vmem:[%s2 + $0xb0] sm:$0xff]
  %v51 = vld [vmem:[%s2 + $0xb8] sm:$0xff]
  %v52 = vld [vmem:[%s2 + $0xc0] sm:$0xff]
  %v53 = vld [vmem:[%s2 + $0xc8] sm:$0xff]
  %v54 = vld [vmem:[%s2 + $0xd0] sm:$0xff]
  %v55 = vld [vmem:[%s2 + $0xd8] sm:$0xff]
  %v56 = vld [vmem:[%s2 + $0xe0] sm:$0xff]
  %v57 = vld [vmem:[%s2 + $0xe8] sm:$0xff]
  %v58 = vld [vmem:[%s2 + $0xf0] sm:$0xff]
  %v59 = vld [vmem:[%s2 + $0xf8] sm:$0xff]
  %60 = vmatprep.subr.mxu0 %v29
  %61 = vmatpush1.msra.mxu0 %v28
  %62 = vmatprep.subr.mxu0 %v31
  %63 = vmatpush1.msra.mxu0 %v30
  %64 = vmatprep.subr.mxu0 %v33
  %65 = vmatpush1.msra.mxu0 %v32
  %66 = vmatprep.subr.mxu0 %v35
  %67 = vmatpush1.msra.mxu0 %v34
  %68 = vmatprep.subr.mxu0 %v37
  %69 = vmatpush1.msra.mxu0 %v36
  %70 = vmatprep.subr.mxu0 %v39
  %71 = vmatpush1.msra.mxu0 %v38
  %72 = vmatprep.subr.mxu0 %v41
  %73 = vmatpush1.msra.mxu0 %v40
  %74 = vmatprep.subr.mxu0 %v43
  %75 = vmatpush1.msra.mxu0 %v42
  %76 = vmatprep.subr.mxu0 %v45
  %77 = vmatpush1.msra.mxu0 %v44
  %78 = vmatprep.subr.mxu0 %v47
  %79 = vmatpush1.msra.mxu0 %v46
  %80 = vmatprep.subr.mxu0 %v49
  %81 = vmatpush1.msra.mxu0 %v48
  %82 = vmatprep.subr.mxu0 %v51
  %83 = vmatpush1.msra.mxu0 %v50
  %84 = vmatprep.subr.mxu0 %v53
  %85 = vmatpush1.msra.mxu0 %v52
  %86 = vmatprep.subr.mxu0 %v55
  %87 = vmatpush1.msra.mxu0 %v54
  %88 = vmatprep.subr.mxu0 %v57
  %89 = vmatpush1.msra.mxu0 %v56
  %90 = vmatprep.subr.mxu0 %v59
  %91 = vmatpush1.msra.mxu0 %v58
  %92 = vmatprep.subr.mxu0 0.0
  %93 = vmatpush1.msra.mxu0 0.0
  %94 = vmatprep.subr.mxu0 0.0
  %95 = vmatpush1.msra.mxu0 0.0
  %96 = vmatprep.subr.mxu0 0.0
  %97 = vmatpush1.msra.mxu0 0.0
  %98 = vmatprep.subr.mxu0 0.0
  %99 = vmatpush1.msra.mxu0 0.0
  %100 = vmatprep.subr.mxu0 0.0
  %101 = vmatpush1.msra.mxu0 0.0
  %102 = vmatprep.subr.mxu0 0.0
  %103 = vmatpush1.msra.mxu0 0.0
  %104 = vmatprep.subr.mxu0 0.0
  %105 = vmatpush1.msra.mxu0 0.0
  %106 = vmatprep.subr.mxu0 0.0
  %107 = vmatpush1.msra.mxu0 0.0
  %108 = vmatprep.subr.mxu0 0.0
  %109 = vmatpush1.msra.mxu0 0.0
  %110 = vmatprep.subr.mxu0 0.0
  %111 = vmatpush1.msra.mxu0 0.0
  %112 = vmatprep.subr.mxu0 0.0
  %113 = vmatpush1.msra.mxu0 0.0
  %114 = vmatprep.subr.mxu0 0.0
  %115 = vmatpush1.msra.mxu0 0.0
  %116 = vmatprep.subr.mxu0 0.0
  %117 = vmatpush1.msra.mxu0 0.0
  %118 = vmatprep.subr.mxu0 0.0
  %119 = vmatpush1.msra.mxu0 0.0
  %120 = vmatprep.subr.mxu0 0.0
  %121 = vmatpush1.msra.mxu0 0.0
  %122 = vmatprep.subr.mxu0 0.0
  %123 = vmatpush1.msra.mxu0 0.0
  %124 = vmatprep.mubr.f32.mxu0 0.0
  %125 = vmatmul.mubr.f32.gmra.mrb[0].mxu0 %v26
  %v126 = vpop.f32.mrb[0].mxu0
  %v127 = vadd.f32 0.0, %v126
  %v128 = vpop.f32.mrb[0].mxu0
  %v129 = vadd.f32 0.0, %v128
  %130 = vdwg.mxu0
  %132 = vset.pattern.permute.xlu0 0
  %133 = vperm.xlu0 %132, %v27
  %v134 = vpop.permute.xlu0 %133
  %v136 = vmul.f32 %v134, %v127
  %137 = vset.pattern.permute.xlu0 1
  %138 = vperm.xlu0 %137, %v27
  %v139 = vpop.permute.xlu0 %138
  %v141 = vmul.f32 %v139, %v127
  %143 = vrot.lane.b32.xlu0 %v141, 96
  %v144 = vpop.permute.xlu0 %143
  %v146 = vadd.f32 %v136, %v144
  %147 = vset.pattern.permute.xlu0 2
  %148 = vperm.xlu0 %147, %v27
  %v149 = vpop.permute.xlu0 %148
  %v151 = vmul.f32 %v149, %v127
  %153 = vrot.lane.b32.xlu0 %v151, 64
  %v154 = vpop.permute.xlu0 %153
  %v156 = vadd.f32 %v146, %v154
  %157 = vset.pattern.permute.xlu0 3
  %158 = vperm.xlu0 %157, %v27
  %v159 = vpop.permute.xlu0 %158
  %v161 = vmul.f32 %v159, %v127
  %163 = vrot.lane.b32.xlu0 %v161, 32
  %v164 = vpop.permute.xlu0 %163
  %v166 = vadd.f32 %v156, %v164
  %167 = vset.pattern.permute.xlu0 4
  %168 = vperm.xlu0 %167, %v27
  %v169 = vpop.permute.xlu0 %168
  %v171 = vmul.f32 %v169, %v129
  %v172 = vadd.f32 %v166, %v171
  %173 = vset.pattern.permute.xlu0 5
  %174 = vperm.xlu0 %173, %v27
  %v175 = vpop.permute.xlu0 %174
  %v177 = vmul.f32 %v175, %v129
  %179 = vrot.lane.b32.xlu0 %v177, 96
  %v180 = vpop.permute.xlu0 %179
  %v182 = vadd.f32 %v172, %v180
  %183 = vset.pattern.permute.xlu0 6
  %184 = vperm.xlu0 %183, %v27
  %v185 = vpop.permute.xlu0 %184
  %v187 = vmul.f32 %v185, %v129
  %189 = vrot.lane.b32.xlu0 %v187, 64
  %v190 = vpop.permute.xlu0 %189
  %v192 = vadd.f32 %v182, %v190
  %193 = vset.pattern.permute.xlu0 7
  %194 = vperm.xlu0 %193, %v27
  %v195 = vpop.permute.xlu0 %194
  %v197 = vmul.f32 %v195, %v129
  %199 = vrot.lane.b32.xlu0 %v197, 32
  %v200 = vpop.permute.xlu0 %199
  %v202 = vadd.f32 %v192, %v200
  %203 = vset.pattern.permute.xlu0 8
  %204 = vperm.xlu0 %203, %v27
  %v205 = vpop.permute.xlu0 %204
  %v207 = vmul.f32 %v205, %v127
  %208 = vset.pattern.permute.xlu0 9
  %209 = vperm.xlu0 %208, %v27
  %v210 = vpop.permute.xlu0 %209
  %v212 = vmul.f32 %v210, %v127
  %214 = vrot.lane.b32.xlu0 %v212, 96
  %v215 = vpop.permute.xlu0 %214
  %v217 = vadd.f32 %v207, %v215
  %218 = vset.pattern.permute.xlu0 10
  %219 = vperm.xlu0 %218, %v27
  %v220 = vpop.permute.xlu0 %219
  %v222 = vmul.f32 %v220, %v127
  %224 = vrot.lane.b32.xlu0 %v222, 64
  %v225 = vpop.permute.xlu0 %224
  %v227 = vadd.f32 %v217, %v225
  %228 = vset.pattern.permute.xlu0 11
  %229 = vperm.xlu0 %228, %v27
  %v230 = vpop.permute.xlu0 %229
  %v232 = vmul.f32 %v230, %v127
  %234 = vrot.lane.b32.xlu0 %v232, 32
  %v235 = vpop.permute.xlu0 %234
  %v237 = vadd.f32 %v227, %v235
  %238 = vset.pattern.permute.xlu0 12
  %239 = vperm.xlu0 %238, %v27
  %v240 = vpop.permute.xlu0 %239
  %v242 = vmul.f32 %v240, %v129
  %v243 = vadd.f32 %v237, %v242
  %244 = vset.pattern.permute.xlu0 13
  %245 = vperm.xlu0 %244, %v27
  %v246 = vpop.permute.xlu0 %245
  %v248 = vmul.f32 %v246, %v129
  %250 = vrot.lane.b32.xlu0 %v248, 96
  %v251 = vpop.permute.xlu0 %250
  %v253 = vadd.f32 %v243, %v251
  %254 = vset.pattern.permute.xlu0 14
  %255 = vperm.xlu0 %254, %v27
  %v256 = vpop.permute.xlu0 %255
  %v258 = vmul.f32 %v256, %v129
  %260 = vrot.lane.b32.xlu0 %v258, 64
  %v261 = vpop.permute.xlu0 %260
  %v263 = vadd.f32 %v253, %v261
  %264 = vset.pattern.permute.xlu0 15
  %265 = vperm.xlu0 %264, %v27
  %v266 = vpop.permute.xlu0 %265
  %v268 = vmul.f32 %v266, %v129
  %270 = vrot.lane.b32.xlu0 %v268, 32
  %v271 = vpop.permute.xlu0 %270
  %v273 = vadd.f32 %v263, %v271
  %274 = vset.pattern.permute.xlu0 16
  %275 = vperm.xlu0 %274, %v27
  %v276 = vpop.permute.xlu0 %275
  %v278 = vmul.f32 %v276, %v127
  %279 = vset.pattern.permute.xlu0 17
  %280 = vperm.xlu0 %279, %v27
  %v281 = vpop.permute.xlu0 %280
  %v283 = vmul.f32 %v281, %v127
  %285 = vrot.lane.b32.xlu0 %v283, 96
  %v286 = vpop.permute.xlu0 %285
  %v288 = vadd.f32 %v278, %v286
  %289 = vset.pattern.permute.xlu0 18
  %290 = vperm.xlu0 %289, %v27
  %v291 = vpop.permute.xlu0 %290
  %v293 = vmul.f32 %v291, %v127
  %295 = vrot.lane.b32.xlu0 %v293, 64
  %v296 = vpop.permute.xlu0 %295
  %v298 = vadd.f32 %v288, %v296
  %299 = vset.pattern.permute.xlu0 19
  %300 = vperm.xlu0 %299, %v27
  %v301 = vpop.permute.xlu0 %300
  %v303 = vmul.f32 %v301, %v127
  %305 = vrot.lane.b32.xlu0 %v303, 32
  %v306 = vpop.permute.xlu0 %305
  %v308 = vadd.f32 %v298, %v306
  %309 = vset.pattern.permute.xlu0 20
  %310 = vperm.xlu0 %309, %v27
  %v311 = vpop.permute.xlu0 %310
  %v313 = vmul.f32 %v311, %v129
  %v314 = vadd.f32 %v308, %v313
  %315 = vset.pattern.permute.xlu0 21
  %316 = vperm.xlu0 %315, %v27
  %v317 = vpop.permute.xlu0 %316
  %v319 = vmul.f32 %v317, %v129
  %321 = vrot.lane.b32.xlu0 %v319, 96
  %v322 = vpop.permute.xlu0 %321
  %v324 = vadd.f32 %v314, %v322
  %325 = vset.pattern.permute.xlu0 22
  %326 = vperm.xlu0 %325, %v27
  %v327 = vpop.permute.xlu0 %326
  %v329 = vmul.f32 %v327, %v129
  %331 = vrot.lane.b32.xlu0 %v329, 64
  %v332 = vpop.permute.xlu0 %331
  %v334 = vadd.f32 %v324, %v332
  %335 = vset.pattern.permute.xlu0 23
  %336 = vperm.xlu0 %335, %v27
  %v337 = vpop.permute.xlu0 %336
  %v339 = vmul.f32 %v337, %v129
  %341 = vrot.lane.b32.xlu0 %v339, 32
  %v342 = vpop.permute.xlu0 %341
  %v344 = vadd.f32 %v334, %v342
  %345 = vset.pattern.permute.xlu0 24
  %346 = vperm.xlu0 %345, %v27
  %v347 = vpop.permute.xlu0 %346
  %v349 = vmul.f32 %v347, %v127
  %350 = vset.pattern.permute.xlu0 25
  %351 = vperm.xlu0 %350, %v27
  %v352 = vpop.permute.xlu0 %351
  %v354 = vmul.f32 %v352, %v127
  %356 = vrot.lane.b32.xlu0 %v354, 96
  %v357 = vpop.permute.xlu0 %356
  %v359 = vadd.f32 %v349, %v357
  %360 = vset.pattern.permute.xlu0 26
  %361 = vperm.xlu0 %360, %v27
  %v362 = vpop.permute.xlu0 %361
  %v364 = vmul.f32 %v362, %v127
  %366 = vrot.lane.b32.xlu0 %v364, 64
  %v367 = vpop.permute.xlu0 %366
  %v369 = vadd.f32 %v359, %v367
  %370 = vset.pattern.permute.xlu0 27
  %371 = vperm.xlu0 %370, %v27
  %v372 = vpop.permute.xlu0 %371
  %v374 = vmul.f32 %v372, %v127
  %376 = vrot.lane.b32.xlu0 %v374, 32
  %v377 = vpop.permute.xlu0 %376
  %v379 = vadd.f32 %v369, %v377
  %380 = vset.pattern.permute.xlu0 28
  %381 = vperm.xlu0 %380, %v27
  %v382 = vpop.permute.xlu0 %381
  %v384 = vmul.f32 %v382, %v129
  %v385 = vadd.f32 %v379, %v384
  %386 = vset.pattern.permute.xlu0 29
  %387 = vperm.xlu0 %386, %v27
  %v388 = vpop.permute.xlu0 %387
  %v390 = vmul.f32 %v388, %v129
  %392 = vrot.lane.b32.xlu0 %v390, 96
  %v393 = vpop.permute.xlu0 %392
  %v395 = vadd.f32 %v385, %v393
  %396 = vset.pattern.permute.xlu0 30
  %397 = vperm.xlu0 %396, %v27
  %v398 = vpop.permute.xlu0 %397
  %v400 = vmul.f32 %v398, %v129
  %402 = vrot.lane.b32.xlu0 %v400, 64
  %v403 = vpop.permute.xlu0 %402
  %v405 = vadd.f32 %v395, %v403
  %406 = vset.pattern.permute.xlu0 31
  %407 = vperm.xlu0 %406, %v27
  %v408 = vpop.permute.xlu0 %407
  %v410 = vmul.f32 %v408, %v129
  %412 = vrot.lane.b32.xlu0 %v410, 32
  %v413 = vpop.permute.xlu0 %412
  %v415 = vadd.f32 %v405, %v413
  %416 = vset.pattern.permute.xlu0 32
  %417 = vperm.xlu0 %416, %v27
  %v418 = vpop.permute.xlu0 %417
  %v420 = vmul.f32 %v418, %v127
  %421 = vset.pattern.permute.xlu0 33
  %422 = vperm.xlu0 %421, %v27
  %v423 = vpop.permute.xlu0 %422
  %v425 = vmul.f32 %v423, %v127
  %427 = vrot.lane.b32.xlu0 %v425, 96
  %v428 = vpop.permute.xlu0 %427
  %v430 = vadd.f32 %v420, %v428
  %431 = vset.pattern.permute.xlu0 34
  %432 = vperm.xlu0 %431, %v27
  %v433 = vpop.permute.xlu0 %432
  %v435 = vmul.f32 %v433, %v127
  %437 = vrot.lane.b32.xlu0 %v435, 64
  %v438 = vpop.permute.xlu0 %437
  %v440 = vadd.f32 %v430, %v438
  %441 = vset.pattern.permute.xlu0 35
  %442 = vperm.xlu0 %441, %v27
  %v443 = vpop.permute.xlu0 %442
  %v445 = vmul.f32 %v443, %v127
  %447 = vrot.lane.b32.xlu0 %v445, 32
  %v448 = vpop.permute.xlu0 %447
  %v450 = vadd.f32 %v440, %v448
  %451 = vset.pattern.permute.xlu0 36
  %452 = vperm.xlu0 %451, %v27
  %v453 = vpop.permute.xlu0 %452
  %v455 = vmul.f32 %v453, %v129
  %v456 = vadd.f32 %v450, %v455
  %457 = vset.pattern.permute.xlu0 37
  %458 = vperm.xlu0 %457, %v27
  %v459 = vpop.permute.xlu0 %458
  %v461 = vmul.f32 %v459, %v129
  %463 = vrot.lane.b32.xlu0 %v461, 96
  %v464 = vpop.permute.xlu0 %463
  %v466 = vadd.f32 %v456, %v464
  %467 = vset.pattern.permute.xlu0 38
  %468 = vperm.xlu0 %467, %v27
  %v469 = vpop.permute.xlu0 %468
  %v471 = vmul.f32 %v469, %v129
  %473 = vrot.lane.b32.xlu0 %v471, 64
  %v474 = vpop.permute.xlu0 %473
  %v476 = vadd.f32 %v466, %v474
  %477 = vset.pattern.permute.xlu0 39
  %478 = vperm.xlu0 %477, %v27
  %v479 = vpop.permute.xlu0 %478
  %v481 = vmul.f32 %v479, %v129
  %483 = vrot.lane.b32.xlu0 %v481, 32
  %v484 = vpop.permute.xlu0 %483
  %v486 = vadd.f32 %v476, %v484
  %487 = vset.pattern.permute.xlu0 40
  %488 = vperm.xlu0 %487, %v27
  %v489 = vpop.permute.xlu0 %488
  %v491 = vmul.f32 %v489, %v127
  %492 = vset.pattern.permute.xlu0 41
  %493 = vperm.xlu0 %492, %v27
  %v494 = vpop.permute.xlu0 %493
  %v496 = vmul.f32 %v494, %v127
  %498 = vrot.lane.b32.xlu0 %v496, 96
  %v499 = vpop.permute.xlu0 %498
  %v501 = vadd.f32 %v491, %v499
  %502 = vset.pattern.permute.xlu0 42
  %503 = vperm.xlu0 %502, %v27
  %v504 = vpop.permute.xlu0 %503
  %v506 = vmul.f32 %v504, %v127
  %508 = vrot.lane.b32.xlu0 %v506, 64
  %v509 = vpop.permute.xlu0 %508
  %v511 = vadd.f32 %v501, %v509
  %512 = vset.pattern.permute.xlu0 43
  %513 = vperm.xlu0 %512, %v27
  %v514 = vpop.permute.xlu0 %513
  %v516 = vmul.f32 %v514, %v127
  %518 = vrot.lane.b32.xlu0 %v516, 32
  %v519 = vpop.permute.xlu0 %518
  %v521 = vadd.f32 %v511, %v519
  %522 = vset.pattern.permute.xlu0 44
  %523 = vperm.xlu0 %522, %v27
  %v524 = vpop.permute.xlu0 %523
  %v526 = vmul.f32 %v524, %v129
  %v527 = vadd.f32 %v521, %v526
  %528 = vset.pattern.permute.xlu0 45
  %529 = vperm.xlu0 %528, %v27
  %v530 = vpop.permute.xlu0 %529
  %v532 = vmul.f32 %v530, %v129
  %534 = vrot.lane.b32.xlu0 %v532, 96
  %v535 = vpop.permute.xlu0 %534
  %v537 = vadd.f32 %v527, %v535
  %538 = vset.pattern.permute.xlu0 46
  %539 = vperm.xlu0 %538, %v27
  %v540 = vpop.permute.xlu0 %539
  %v542 = vmul.f32 %v540, %v129
  %544 = vrot.lane.b32.xlu0 %v542, 64
  %v545 = vpop.permute.xlu0 %544
  %v547 = vadd.f32 %v537, %v545
  %548 = vset.pattern.permute.xlu0 47
  %549 = vperm.xlu0 %548, %v27
  %v550 = vpop.permute.xlu0 %549
  %v552 = vmul.f32 %v550, %v129
  %554 = vrot.lane.b32.xlu0 %v552, 32
  %v555 = vpop.permute.xlu0 %554
  %v557 = vadd.f32 %v547, %v555
  %558 = vset.pattern.permute.xlu0 48
  %559 = vperm.xlu0 %558, %v27
  %v560 = vpop.permute.xlu0 %559
  %v562 = vmul.f32 %v560, %v127
  %563 = vset.pattern.permute.xlu0 49
  %564 = vperm.xlu0 %563, %v27
  %v565 = vpop.permute.xlu0 %564
  %v567 = vmul.f32 %v565, %v127
  %569 = vrot.lane.b32.xlu0 %v567, 96
  %v570 = vpop.permute.xlu0 %569
  %v572 = vadd.f32 %v562, %v570
  %573 = vset.pattern.permute.xlu0 50
  %574 = vperm.xlu0 %573, %v27
  %v575 = vpop.permute.xlu0 %574
  %v577 = vmul.f32 %v575, %v127
  %579 = vrot.lane.b32.xlu0 %v577, 64
  %v580 = vpop.permute.xlu0 %579
  %v582 = vadd.f32 %v572, %v580
  %583 = vset.pattern.permute.xlu0 51
  %584 = vperm.xlu0 %583, %v27
  %v585 = vpop.permute.xlu0 %584
  %v587 = vmul.f32 %v585, %v127
  %589 = vrot.lane.b32.xlu0 %v587, 32
  %v590 = vpop.permute.xlu0 %589
  %v592 = vadd.f32 %v582, %v590
  %593 = vset.pattern.permute.xlu0 52
  %594 = vperm.xlu0 %593, %v27
  %v595 = vpop.permute.xlu0 %594
  %v597 = vmul.f32 %v595, %v129
  %v598 = vadd.f32 %v592, %v597
  %599 = vset.pattern.permute.xlu0 53
  %600 = vperm.xlu0 %599, %v27
  %v601 = vpop.permute.xlu0 %600
  %v603 = vmul.f32 %v601, %v129
  %605 = vrot.lane.b32.xlu0 %v603, 96
  %v606 = vpop.permute.xlu0 %605
  %v608 = vadd.f32 %v598, %v606
  %609 = vset.pattern.permute.xlu0 54
  %610 = vperm.xlu0 %609, %v27
  %v611 = vpop.permute.xlu0 %610
  %v613 = vmul.f32 %v611, %v129
  %615 = vrot.lane.b32.xlu0 %v613, 64
  %v616 = vpop.permute.xlu0 %615
  %v618 = vadd.f32 %v608, %v616
  %619 = vset.pattern.permute.xlu0 55
  %620 = vperm.xlu0 %619, %v27
  %v621 = vpop.permute.xlu0 %620
  %v623 = vmul.f32 %v621, %v129
  %625 = vrot.lane.b32.xlu0 %v623, 32
  %v626 = vpop.permute.xlu0 %625
  %v628 = vadd.f32 %v618, %v626
  %629 = vset.pattern.permute.xlu0 56
  %630 = vperm.xlu0 %629, %v27
  %v631 = vpop.permute.xlu0 %630
  %v633 = vmul.f32 %v631, %v127
  %634 = vset.pattern.permute.xlu0 57
  %635 = vperm.xlu0 %634, %v27
  %v636 = vpop.permute.xlu0 %635
  %v638 = vmul.f32 %v636, %v127
  %640 = vrot.lane.b32.xlu0 %v638, 96
  %v641 = vpop.permute.xlu0 %640
  %v643 = vadd.f32 %v633, %v641
  %644 = vset.pattern.permute.xlu0 58
  %645 = vperm.xlu0 %644, %v27
  %v646 = vpop.permute.xlu0 %645
  %v648 = vmul.f32 %v646, %v127
  %650 = vrot.lane.b32.xlu0 %v648, 64
  %v651 = vpop.permute.xlu0 %650
  %v653 = vadd.f32 %v643, %v651
  %654 = vset.pattern.permute.xlu0 59
  %655 = vperm.xlu0 %654, %v27
  %v656 = vpop.permute.xlu0 %655
  %v658 = vmul.f32 %v656, %v127
  %660 = vrot.lane.b32.xlu0 %v658, 32
  %v661 = vpop.permute.xlu0 %660
  %v663 = vadd.f32 %v653, %v661
  %664 = vset.pattern.permute.xlu0 60
  %665 = vperm.xlu0 %664, %v27
  %v666 = vpop.permute.xlu0 %665
  %v668 = vmul.f32 %v666, %v129
  %v669 = vadd.f32 %v663, %v668
  %670 = vset.pattern.permute.xlu0 61
  %671 = vperm.xlu0 %670, %v27
  %v672 = vpop.permute.xlu0 %671
  %v674 = vmul.f32 %v672, %v129
  %676 = vrot.lane.b32.xlu0 %v674, 96
  %v677 = vpop.permute.xlu0 %676
  %v679 = vadd.f32 %v669, %v677
  %680 = vset.pattern.permute.xlu0 62
  %681 = vperm.xlu0 %680, %v27
  %v682 = vpop.permute.xlu0 %681
  %v684 = vmul.f32 %v682, %v129
  %686 = vrot.lane.b32.xlu0 %v684, 64
  %v687 = vpop.permute.xlu0 %686
  %v689 = vadd.f32 %v679, %v687
  %690 = vset.pattern.permute.xlu0 63
  %691 = vperm.xlu0 %690, %v27
  %v692 = vpop.permute.xlu0 %691
  %v694 = vmul.f32 %v692, %v129
  %696 = vrot.lane.b32.xlu0 %v694, 32
  %v697 = vpop.permute.xlu0 %696
  %v699 = vadd.f32 %v689, %v697
  %701 = vrot.lane.b32.xlu0 %v273, 32
  %v702 = vpop.permute.xlu0 %701
  %705 = vrot.lane.b32.xlu0 %v344, 64
  %v706 = vpop.permute.xlu0 %705
  %709 = vrot.lane.b32.xlu0 %v415, 96
  %v710 = vpop.permute.xlu0 %709
  %713 = vrot.lane.b32.xlu0 %v557, 32
  %v714 = vpop.permute.xlu0 %713
  %717 = vrot.lane.b32.xlu0 %v628, 64
  %v718 = vpop.permute.xlu0 %717
  %721 = vrot.lane.b32.xlu0 %v699, 96
  %v722 = vpop.permute.xlu0 %721
  %vm724 = vcmask 261120
  %v725 = vsel %vm724, %v202, %v702
  %vm726 = vcmask 523264
  %v727 = vsel %vm726, %v725, %v706
  %vm728 = vcmask 785408
  %v729 = vsel %vm728, %v727, %v710
  %v730 = vsel %vm724, %v486, %v714
  %v731 = vsel %vm726, %v730, %v718
  %v732 = vsel %vm728, %v731, %v722
  %v733 = vld [vmem:[%s3] sm:$0x3]
  %v735 = vlaneseq
  %v736 = vshrl.u32 %v735, 7
  %v737 = vsub.s32 0, %v736
  %v738 = vrot.slane %v733, %v737
  %v739 = vlaneseq
  %v740 = vshrl.u32 %v739, 7
  %v741 = vsub.s32 1, %v740
  %v742 = vrot.slane %v733, %v741
  %v745 = vadd.f32 %v729, %v738
  %v746 = vadd.f32 %v732, %v742
  %v747 = vmax.f32 %v745, 0.0
  %v748 = vmax.f32 %v746, 0.0
  %v749 = vld [vmem:[%s4] sm:$0xff]
  %v750 = vld [vmem:[%s4 + $0x8] sm:$0xff]
  %v751 = vld [vmem:[%s4 + $0x10] sm:$0xff]
  %v752 = vld [vmem:[%s4 + $0x18] sm:$0xff]
  %v753 = vld [vmem:[%s4 + $0x20] sm:$0xff]
  %v754 = vld [vmem:[%s4 + $0x28] sm:$0xff]
  %v755 = vld [vmem:[%s4 + $0x30] sm:$0xff]
  %v756 = vld [vmem:[%s4 + $0x38] sm:$0xff]
  %v757 = vld [vmem:[%s4 + $0x40] sm:$0xff]
  %v758 = vld [vmem:[%s4 + $0x48] sm:$0xff]
  %v759 = vld [vmem:[%s4 + $0x50] sm:$0xff]
  %v760 = vld [vmem:[%s4 + $0x58] sm:$0xff]
  %v761 = vld [vmem:[%s4 + $0x60] sm:$0xff]
  %v762 = vld [vmem:[%s4 + $0x68] sm:$0xff]
  %v763 = vld [vmem:[%s4 + $0x70] sm:$0xff]
  %v764 = vld [vmem:[%s4 + $0x78] sm:$0xff]
  %v765 = vld [vmem:[%s4 + $0x80] sm:$0xff]
  %v766 = vld [vmem:[%s4 + $0x88] sm:$0xff]
  %v767 = vld [vmem:[%s4 + $0x90] sm:$0xff]
  %v768 = vld [vmem:[%s4 + $0x98] sm:$0xff]
  %v769 = vld [vmem:[%s4 + $0xa0] sm:$0xff]
  %v770 = vld [vmem:[%s4 + $0xa8] sm:$0xff]
  %v771 = vld [vmem:[%s4 + $0xb0] sm:$0xff]
  %v772 = vld [vmem:[%s4 + $0xb8] sm:$0xff]
  %v773 = vld [vmem:[%s4 + $0xc0] sm:$0xff]
  %v774 = vld [vmem:[%s4 + $0xc8] sm:$0xff]
  %v775 = vld [vmem:[%s4 + $0xd0] sm:$0xff]
  %v776 = vld [vmem:[%s4 + $0xd8] sm:$0xff]
  %v777 = vld [vmem:[%s4 + $0xe0] sm:$0xff]
  %v778 = vld [vmem:[%s4 + $0xe8] sm:$0xff]
  %v779 = vld [vmem:[%s4 + $0xf0] sm:$0xff]
  %v780 = vld [vmem:[%s4 + $0xf8] sm:$0xff]
  %781 = vmatprep.subr.mxu0 0.0
  %782 = vmatpush1.msra.mxu0 %v749
  %783 = vmatprep.subr.mxu0 0.0
  %784 = vmatpush1.msra.mxu0 %v750
  %785 = vmatprep.subr.mxu0 0.0
  %786 = vmatpush1.msra.mxu0 %v751
  %787 = vmatprep.subr.mxu0 0.0
  %788 = vmatpush1.msra.mxu0 %v752
  %789 = vmatprep.subr.mxu0 0.0
  %790 = vmatpush1.msra.mxu0 %v753
  %791 = vmatprep.subr.mxu0 0.0
  %792 = vmatpush1.msra.mxu0 %v754
  %793 = vmatprep.subr.mxu0 0.0
  %794 = vmatpush1.msra.mxu0 %v755
  %795 = vmatprep.subr.mxu0 0.0
  %796 = vmatpush1.msra.mxu0 %v756
  %797 = vmatprep.subr.mxu0 0.0
  %798 = vmatpush1.msra.mxu0 %v757
  %799 = vmatprep.subr.mxu0 0.0
  %800 = vmatpush1.msra.mxu0 %v758
  %801 = vmatprep.subr.mxu0 0.0
  %802 = vmatpush1.msra.mxu0 %v759
  %803 = vmatprep.subr.mxu0 0.0
  %804 = vmatpush1.msra.mxu0 %v760
  %805 = vmatprep.subr.mxu0 0.0
  %806 = vmatpush1.msra.mxu0 %v761
  %807 = vmatprep.subr.mxu0 0.0
  %808 = vmatpush1.msra.mxu0 %v762
  %809 = vmatprep.subr.mxu0 0.0
  %810 = vmatpush1.msra.mxu0 %v763
  %811 = vmatprep.subr.mxu0 0.0
  %812 = vmatpush1.msra.mxu0 %v764
  %813 = vmatprep.subr.mxu0 0.0
  %814 = vmatpush1.msra.mxu0 %v765
  %815 = vmatprep.subr.mxu0 0.0
  %816 = vmatpush1.msra.mxu0 %v766
  %817 = vmatprep.subr.mxu0 0.0
  %818 = vmatpush1.msra.mxu0 %v767
  %819 = vmatprep.subr.mxu0 0.0
  %820 = vmatpush1.msra.mxu0 %v768
  %821 = vmatprep.subr.mxu0 0.0
  %822 = vmatpush1.msra.mxu0 %v769
  %823 = vmatprep.subr.mxu0 0.0
  %824 = vmatpush1.msra.mxu0 %v770
  %825 = vmatprep.subr.mxu0 0.0
  %826 = vmatpush1.msra.mxu0 %v771
  %827 = vmatprep.subr.mxu0 0.0
  %828 = vmatpush1.msra.mxu0 %v772
  %829 = vmatprep.subr.mxu0 0.0
  %830 = vmatpush1.msra.mxu0 %v773
  %831 = vmatprep.subr.mxu0 0.0
  %832 = vmatpush1.msra.mxu0 %v774
  %833 = vmatprep.subr.mxu0 0.0
  %834 = vmatpush1.msra.mxu0 %v775
  %835 = vmatprep.subr.mxu0 0.0
  %836 = vmatpush1.msra.mxu0 %v776
  %837 = vmatprep.subr.mxu0 0.0
  %838 = vmatpush1.msra.mxu0 %v777
  %839 = vmatprep.subr.mxu0 0.0
  %840 = vmatpush1.msra.mxu0 %v778
  %841 = vmatprep.subr.mxu0 0.0
  %842 = vmatpush1.msra.mxu0 %v779
  %843 = vmatprep.subr.mxu0 0.0
  %844 = vmatpush1.msra.mxu0 %v780
  %845 = vmatprep.mubr.f32.mxu0 %v748
  %846 = vmatmul.mubr.f32.gmra.mrb[0].mxu0 %v747
  %v847 = vpop.f32.mrb[0].mxu0
  %v848 = vadd.f32 0.0, %v847
  %v849 = vpop.f32.mrb[0].mxu0
  %850 = vdwg.mxu0
  %v851 = vld [vmem:[%s5] sm:$0xff]
  %v852 = vld [vmem:[%s5 + $0x8] sm:$0xff]
  %v853 = vld [vmem:[%s5 + $0x10] sm:$0xff]
  %v854 = vld [vmem:[%s5 + $0x18] sm:$0xff]
  %v855 = vld [vmem:[%s5 + $0x20] sm:$0xff]
  %v856 = vld [vmem:[%s5 + $0x28] sm:$0xff]
  %v857 = vld [vmem:[%s5 + $0x30] sm:$0xff]
  %v858 = vld [vmem:[%s5 + $0x38] sm:$0xff]
  %v859 = vsel %vm726, %v27, 0
  %861 = vmatprep.subr.mxu0 0.0
  %862 = vmatpush1.msra.mxu0 %v851
  %863 = vmatprep.subr.mxu0 0.0
  %864 = vmatpush1.msra.mxu0 %v852
  %865 = vmatprep.subr.mxu0 0.0
  %866 = vmatpush1.msra.mxu0 %v853
  %867 = vmatprep.subr.mxu0 0.0
  %868 = vmatpush1.msra.mxu0 %v854
  %869 = vmatprep.subr.mxu0 0.0
  %870 = vmatpush1.msra.mxu0 %v855
  %871 = vmatprep.subr.mxu0 0.0
  %872 = vmatpush1.msra.mxu0 %v856
  %873 = vmatprep.subr.mxu0 0.0
  %874 = vmatpush1.msra.mxu0 %v857
  %875 = vmatprep.subr.mxu0 0.0
  %876 = vmatpush1.msra.mxu0 %v858
  %877 = vmatprep.subr.mxu0 0.0
  %878 = vmatpush1.msra.mxu0 0.0
  %879 = vmatprep.subr.mxu0 0.0
  %880 = vmatpush1.msra.mxu0 0.0
  %881 = vmatprep.subr.mxu0 0.0
  %882 = vmatpush1.msra.mxu0 0.0
  %883 = vmatprep.subr.mxu0 0.0
  %884 = vmatpush1.msra.mxu0 0.0
  %885 = vmatprep.subr.mxu0 0.0
  %886 = vmatpush1.msra.mxu0 0.0
  %887 = vmatprep.subr.mxu0 0.0
  %888 = vmatpush1.msra.mxu0 0.0
  %889 = vmatprep.subr.mxu0 0.0
  %890 = vmatpush1.msra.mxu0 0.0
  %891 = vmatprep.subr.mxu0 0.0
  %892 = vmatpush1.msra.mxu0 0.0
  %893 = vmatprep.subr.mxu0 0.0
  %894 = vmatpush1.msra.mxu0 0.0
  %895 = vmatprep.subr.mxu0 0.0
  %896 = vmatpush1.msra.mxu0 0.0
  %897 = vmatprep.subr.mxu0 0.0
  %898 = vmatpush1.msra.mxu0 0.0
  %899 = vmatprep.subr.mxu0 0.0
  %900 = vmatpush1.msra.mxu0 0.0
  %901 = vmatprep.subr.mxu0 0.0
  %902 = vmatpush1.msra.mxu0 0.0
  %903 = vmatprep.subr.mxu0 0.0
  %904 = vmatpush1.msra.mxu0 0.0
  %905 = vmatprep.subr.mxu0 0.0
  %906 = vmatpush1.msra.mxu0 0.0
  %907 = vmatprep.subr.mxu0 0.0
  %908 = vmatpush1.msra.mxu0 0.0
  %909 = vmatprep.subr.mxu0 0.0
  %910 = vmatpush1.msra.mxu0 0.0
  %911 = vmatprep.subr.mxu0 0.0
  %912 = vmatpush1.msra.mxu0 0.0
  %913 = vmatprep.subr.mxu0 0.0
  %914 = vmatpush1.msra.mxu0 0.0
  %915 = vmatprep.subr.mxu0 0.0
  %916 = vmatpush1.msra.mxu0 0.0
  %917 = vmatprep.subr.mxu0 0.0
  %918 = vmatpush1.msra.mxu0 0.0
  %919 = vmatprep.subr.mxu0 0.0
  %920 = vmatpush1.msra.mxu0 0.0
  %921 = vmatprep.subr.mxu0 0.0
  %922 = vmatpush1.msra.mxu0 0.0
  %923 = vmatprep.subr.mxu0 0.0
  %924 = vmatpush1.msra.mxu0 0.0
  %925 = vmatprep.mubr.f32.mxu0 0.0
  %926 = vmatmul.mubr.f32.gmra.mrb[0].mxu0 %v859
  %v927 = vpop.f32.mrb[0].mxu0
  %v928 = vadd.f32 0.0, %v927
  %v929 = vpop.f32.mrb[0].mxu0
  %930 = vdwg.mxu0
  %v931 = vld [vmem:[%s6] sm:$0x1]
  %933 = vset.pattern.permute.xlu0 0
  %934 = vperm.xlu0 %933, %v928
  %v935 = vpop.permute.xlu0 %934
  %v937 = vmul.f32 %v935, %v848
  %v939 = vlaneseq
  %v940 = vshrl.u32 %v939, 7
  %v941 = vsub.s32 0, %v940
  %v942 = vrot.slane %v931, %v941
  %v944 = vadd.f32 %v937, %v942
  %945 = vset.pattern.permute.xlu0 1
  %946 = vperm.xlu0 %945, %v928
  %v947 = vpop.permute.xlu0 %946
  %v949 = vmul.f32 %v947, %v848
  %951 = vrot.lane.b32.xlu0 %v949, 112
  %v952 = vpop.permute.xlu0 %951
  %v954 = vadd.f32 %v944, %v952
  %955 = vset.pattern.permute.xlu0 2
  %956 = vperm.xlu0 %955, %v928
  %v957 = vpop.permute.xlu0 %956
  %v959 = vmul.f32 %v957, %v848
  %961 = vrot.lane.b32.xlu0 %v959, 96
  %v962 = vpop.permute.xlu0 %961
  %v964 = vadd.f32 %v954, %v962
  %965 = vset.pattern.permute.xlu0 3
  %966 = vperm.xlu0 %965, %v928
  %v967 = vpop.permute.xlu0 %966
  %v969 = vmul.f32 %v967, %v848
  %971 = vrot.lane.b32.xlu0 %v969, 80
  %v972 = vpop.permute.xlu0 %971
  %v974 = vadd.f32 %v964, %v972
  %975 = vset.pattern.permute.xlu0 4
  %976 = vperm.xlu0 %975, %v928
  %v977 = vpop.permute.xlu0 %976
  %v979 = vmul.f32 %v977, %v848
  %981 = vrot.lane.b32.xlu0 %v979, 64
  %v982 = vpop.permute.xlu0 %981
  %v984 = vadd.f32 %v974, %v982
  %985 = vset.pattern.permute.xlu0 5
  %986 = vperm.xlu0 %985, %v928
  %v987 = vpop.permute.xlu0 %986
  %v989 = vmul.f32 %v987, %v848
  %991 = vrot.lane.b32.xlu0 %v989, 48
  %v992 = vpop.permute.xlu0 %991
  %v994 = vadd.f32 %v984, %v992
  %995 = vset.pattern.permute.xlu0 6
  %996 = vperm.xlu0 %995, %v928
  %v997 = vpop.permute.xlu0 %996
  %v999 = vmul.f32 %v997, %v848
  %1001 = vrot.lane.b32.xlu0 %v999, 32
  %v1002 = vpop.permute.xlu0 %1001
  %v1004 = vadd.f32 %v994, %v1002
  %1005 = vset.pattern.permute.xlu0 7
  %1006 = vperm.xlu0 %1005, %v928
  %v1007 = vpop.permute.xlu0 %1006
  %v1009 = vmul.f32 %v1007, %v848
  %1011 = vrot.lane.b32.xlu0 %v1009, 16
  %v1012 = vpop.permute.xlu0 %1011
  %v1014 = vadd.f32 %v1004, %v1012
  %1015 = vset.pattern.permute.xlu0 8
  %1016 = vperm.xlu0 %1015, %v928
  %v1017 = vpop.permute.xlu0 %1016
  %v1019 = vmul.f32 %v1017, %v848
  %1020 = vrot.lane.b32.xlu0 %v942, 112
  %v1021 = vpop.permute.xlu0 %1020
  %v1023 = vadd.f32 %v1019, %v1021
  %1024 = vset.pattern.permute.xlu0 9
  %1025 = vperm.xlu0 %1024, %v928
  %v1026 = vpop.permute.xlu0 %1025
  %v1028 = vmul.f32 %v1026, %v848
  %1030 = vrot.lane.b32.xlu0 %v1028, 112
  %v1031 = vpop.permute.xlu0 %1030
  %v1033 = vadd.f32 %v1023, %v1031
  %1034 = vset.pattern.permute.xlu0 10
  %1035 = vperm.xlu0 %1034, %v928
  %v1036 = vpop.permute.xlu0 %1035
  %v1038 = vmul.f32 %v1036, %v848
  %1040 = vrot.lane.b32.xlu0 %v1038, 96
  %v1041 = vpop.permute.xlu0 %1040
  %v1043 = vadd.f32 %v1033, %v1041
  %1044 = vset.pattern.permute.xlu0 11
  %1045 = vperm.xlu0 %1044, %v928
  %v1046 = vpop.permute.xlu0 %1045
  %v1048 = vmul.f32 %v1046, %v848
  %1050 = vrot.lane.b32.xlu0 %v1048, 80
  %v1051 = vpop.permute.xlu0 %1050
  %v1053 = vadd.f32 %v1043, %v1051
  %1054 = vset.pattern.permute.xlu0 12
  %1055 = vperm.xlu0 %1054, %v928
  %v1056 = vpop.permute.xlu0 %1055
  %v1058 = vmul.f32 %v1056, %v848
  %1060 = vrot.lane.b32.xlu0 %v1058, 64
  %v1061 = vpop.permute.xlu0 %1060
  %v1063 = vadd.f32 %v1053, %v1061
  %1064 = vset.pattern.permute.xlu0 13
  %1065 = vperm.xlu0 %1064, %v928
  %v1066 = vpop.permute.xlu0 %1065
  %v1068 = vmul.f32 %v1066, %v848
  %1070 = vrot.lane.b32.xlu0 %v1068, 48
  %v1071 = vpop.permute.xlu0 %1070
  %v1073 = vadd.f32 %v1063, %v1071
  %1074 = vset.pattern.permute.xlu0 14
  %1075 = vperm.xlu0 %1074, %v928
  %v1076 = vpop.permute.xlu0 %1075
  %v1078 = vmul.f32 %v1076, %v848
  %1080 = vrot.lane.b32.xlu0 %v1078, 32
  %v1081 = vpop.permute.xlu0 %1080
  %v1083 = vadd.f32 %v1073, %v1081
  %1084 = vset.pattern.permute.xlu0 15
  %1085 = vperm.xlu0 %1084, %v928
  %v1086 = vpop.permute.xlu0 %1085
  %v1088 = vmul.f32 %v1086, %v848
  %1090 = vrot.lane.b32.xlu0 %v1088, 16
  %v1091 = vpop.permute.xlu0 %1090
  %v1093 = vadd.f32 %v1083, %v1091
  %1095 = vrot.lane.b32.xlu0 %v1093, 16
  %v1096 = vpop.permute.xlu0 %1095
  %vm1098 = vcmask 130048
  %v1099 = vsel %vm1098, %v1014, %v1096
  %vm1100 = vcmask 254976
  %1101 = vst.msk [vmem:[%s7] sm:$0x3] %vm1100, %v1099
  // Predicated region
  $region30: #{graph_encoder_forward.1} parent=0 // pred_check
    _
  $region31: #{graph_encoder_forward.1} parent=0 // pred_check_branch
    %1103 = sbr.rel (0) target = $region33
  $region32: #{graph_encoder_forward.1} parent=0 // pred_region
    _
  $region33: #{graph_encoder_forward.1} parent=0 // pred_fallthru
    _
  // Predicated region
  $region34: #{graph_encoder_forward.1} parent=0 // pred_check
    _
  $region35: #{graph_encoder_forward.1} parent=0 // pred_check_branch
    %1105 = sbr.rel (0) target = $region37
  $region36: #{graph_encoder_forward.1} parent=0 // pred_region
    _
  $region37: #{graph_encoder_forward.1} parent=0 // pred_fallthru
    _

</llo_original>
